<compile_context>
chip_gen: v6e
topology: v6e:2x2x1
jax: 0.10.0
libtpu: 0.0.40
codegen_flags: <defaults>
</compile_context>

<pallas_src>
import functools

import jax
import jax.numpy as jnp
from jax.experimental import pallas as pl
from jax.experimental.pallas import tpu as pltpu

D = 128
IN_DIM = 3 * D          # 384
DEFAULT_TM = 256        # row tile: multiple of 256 (v6e/v7x MXU) and 128 (v5e)


def _fused_mlp_kernel(ids_ref,                                   # scalar prefetch (SMEM)
                      x_ref, w1_ref, b1_ref, w2_ref, b2_ref, w3_ref, b3_ref,
                      o_ref):
    """One row-tile of one MLP: relu(relu(x@W1+b1)@W2+b2)@W3+b3.

    Weights arrive as (1, K, N) blocks selected by ids_ref in the index_maps;
    biases as (1, 1, D) f32 blocks. Matmuls run bf16 x bf16 -> f32 on the MXU;
    bias + ReLU are f32 on the VPU.
    """
    del ids_ref  # consumed only by the index_maps

    x = x_ref[...]                                                # (TM, 384) bf16

    h = jnp.dot(x, w1_ref[0], preferred_element_type=jnp.float32)
    h = jnp.maximum(h + b1_ref[0], 0.0)

    h = jnp.dot(h.astype(jnp.bfloat16), w2_ref[0],
                preferred_element_type=jnp.float32)
    h = jnp.maximum(h + b2_ref[0], 0.0)

    h = jnp.dot(h.astype(jnp.bfloat16), w3_ref[0],
                preferred_element_type=jnp.float32)
    h = h + b3_ref[0]

    o_ref[...] = h.astype(o_ref.dtype)


@functools.partial(jax.jit, static_argnames=("tm",))
def pseudo_graph_net_block(n, e, w, node_params, edge_params, world_params,
                           tm=DEFAULT_TM):
    """Fused forward of the three MLPs in a single pallas_call."""
    inputs = (n, e, w)
    param_sets = (node_params, edge_params, world_params)
    out_dtype = n.dtype

    # ---- Stack the three parameter sets along a leading dim of 3. ----------
    w1, b1, w2, b2, w3, b3 = (
        jnp.stack([p[j] for p in param_sets], axis=0) for j in range(6))
    # bf16 MXU operands (halves weight DMA too); biases stay f32.
    w1 = w1.astype(jnp.bfloat16)
    w2 = w2.astype(jnp.bfloat16)
    w3 = w3.astype(jnp.bfloat16)

    # ---- Pad each input to a multiple of tm rows and concatenate. ----------
    padded, tile_counts = [], []
    for x in inputs:
        rows = x.shape[0]
        n_tiles = pl.cdiv(rows, tm)
        pad = n_tiles * tm - rows
        xp = jnp.pad(x, ((0, pad), (0, 0)))
        padded.append(xp.astype(jnp.bfloat16))
        tile_counts.append(n_tiles)
    x_all = jnp.concatenate(padded, axis=0)          # (total_tiles*tm, IN_DIM)
    total_tiles = sum(tile_counts)

    # Per-tile MLP id (scalar-prefetched into SMEM, drives weight index_maps).
    ids = jnp.concatenate(
        [jnp.full((t,), k, jnp.int32) for k, t in enumerate(tile_counts)])

    weight_map = lambda i, ids: (ids[i], 0, 0)

    out = pl.pallas_call(
        _fused_mlp_kernel,
        out_shape=jax.ShapeDtypeStruct((total_tiles * tm, D), out_dtype),
        grid_spec=pltpu.PrefetchScalarGridSpec(
            num_scalar_prefetch=1,
            grid=(total_tiles,),
            in_specs=[
                pl.BlockSpec((tm, IN_DIM), lambda i, ids: (i, 0)),   # x tile
                pl.BlockSpec((1, IN_DIM, D), weight_map),            # W1
                pl.BlockSpec((1, 1, D),      weight_map),            # b1
                pl.BlockSpec((1, D, D),      weight_map),            # W2
                pl.BlockSpec((1, 1, D),      weight_map),            # b2
                pl.BlockSpec((1, D, D),      weight_map),            # W3
                pl.BlockSpec((1, 1, D),      weight_map),            # b3
            ],
            out_specs=pl.BlockSpec((tm, D), lambda i, ids: (i, 0)),
        ),
        compiler_params=pltpu.CompilerParams(
            dimension_semantics=("parallel",)),
    )(ids, x_all, w1, b1, w2, b2, w3, b3)

    # ---- Slice the padded rows back off (bias makes padding nonzero). ------
    results, start = [], 0
    for x, t in zip(inputs, tile_counts):
        rows = x.shape[0]
        results.append(out[start:start + rows])
        start += t * tm
    return tuple(results)


# ----------------------------------------------------------------------------
# Parameter init + pure-JAX reference (matching the kernel's bf16 operands).
# ----------------------------------------------------------------------------
def init_mlp_params(key):
    """Mimics torch.nn.Linear init: U(-1/sqrt(fan_in), +1/sqrt(fan_in))."""
    dims = [(IN_DIM, D), (D, D), (D, D)]
    params = []
    for fan_in, fan_out in dims:
        key, kw, kb = jax.random.split(key, 3)
        bound = 1.0 / jnp.sqrt(fan_in)
        w = jax.random.uniform(kw, (fan_in, fan_out), jnp.float32, -bound, bound)
        b = jax.random.uniform(kb, (1, fan_out), jnp.float32, -bound, bound)
        params += [w, b]
    return tuple(params)


def _round_bf16(x):
    return x.astype(jnp.bfloat16).astype(jnp.float32)


def mlp_reference(x, params):
    """Reference with the same bf16 operand rounding, f32 accumulation."""
    w1, b1, w2, b2, w3, b3 = params
    hp = jax.lax.Precision.HIGHEST
    h = jnp.maximum(
        jnp.dot(_round_bf16(x), _round_bf16(w1), precision=hp) + b1, 0.0)
    h = jnp.maximum(
        jnp.dot(_round_bf16(h), _round_bf16(w2), precision=hp) + b2, 0.0)
    return jnp.dot(_round_bf16(h), _round_bf16(w3), precision=hp) + b3


if __name__ == "__main__":
    key = jax.random.PRNGKey(0)
    k_n, k_e, k_w, k_pn, k_pe, k_pw = jax.random.split(key, 6)

    # Small entity counts; feature dims are fixed by the module (3*D -> D).
    n = jax.random.normal(k_n, (16, IN_DIM), jnp.float32)   # nodes
    e = jax.random.normal(k_e, (32, IN_DIM), jnp.float32)   # edges
    w = jax.random.normal(k_w, (8, IN_DIM), jnp.float32)    # world

    node_params = init_mlp_params(k_pn)
    edge_params = init_mlp_params(k_pe)
    world_params = init_mlp_params(k_pw)

    n_out, e_out, w_out = pseudo_graph_net_block(
        n, e, w, node_params, edge_params, world_params)
    jax.block_until_ready((n_out, e_out, w_out))

    # Sanity-check against the plain-JAX reference (bf16 operands, f32 accum).
    for out, x, p in ((n_out, n, node_params),
                      (e_out, e, edge_params),
                      (w_out, w, world_params)):
        ref = mlp_reference(x, p)
        assert out.shape == ref.shape == (x.shape[0], D)
        assert jnp.allclose(out.astype(jnp.float32), ref, atol=1e-2, rtol=1e-2)

    print("KERNEL_OK")
</pallas_src>

<mosaic_0001>
module attributes {stable_mosaic.version = 11 : i64} {
  func.func @_fused_mlp_kernel(%arg0: i32, %arg1: memref<3xi32, #tpu.memory_space<smem>>, %arg2: memref<256x384xbf16, #tpu.memory_space<vmem>>, %arg3: memref<1x384x128xbf16, #tpu.memory_space<vmem>>, %arg4: memref<1x1x128xf32, #tpu.memory_space<vmem>>, %arg5: memref<1x128x128xbf16, #tpu.memory_space<vmem>>, %arg6: memref<1x1x128xf32, #tpu.memory_space<vmem>>, %arg7: memref<1x128x128xbf16, #tpu.memory_space<vmem>>, %arg8: memref<1x1x128xf32, #tpu.memory_space<vmem>>, %arg9: memref<256x128xf32, #tpu.memory_space<vmem>>) attributes {dimension_semantics = [#tpu.dimension_semantics<parallel>], iteration_bounds = array<i64: 3>, scalar_prefetch = 1 : i64, scratch_operands = 0 : i64, tpu.core_type = #tpu.core_type<tc>, window_params = [{transform_indices = @transform_0, window_bounds = array<i64: 256, 384>}, {transform_indices = @transform_1, window_bounds = array<i64: 1, 384, 128>}, {transform_indices = @transform_2, window_bounds = array<i64: 1, 1, 128>}, {transform_indices = @transform_3, window_bounds = array<i64: 1, 128, 128>}, {transform_indices = @transform_4, window_bounds = array<i64: 1, 1, 128>}, {transform_indices = @transform_5, window_bounds = array<i64: 1, 128, 128>}, {transform_indices = @transform_6, window_bounds = array<i64: 1, 1, 128>}, {transform_indices = @transform_7, window_bounds = array<i64: 256, 128>}]} {
    %c0 = arith.constant 0 : index
    %c0_0 = arith.constant 0 : index
    %0 = vector.load %arg2[%c0, %c0_0] : memref<256x384xbf16, #tpu.memory_space<vmem>>, vector<256x384xbf16>
    %c0_1 = arith.constant 0 : index
    %c0_2 = arith.constant 0 : index
    %c0_3 = arith.constant 0 : index
    %1 = vector.load %arg3[%c0_1, %c0_2, %c0_3] : memref<1x384x128xbf16, #tpu.memory_space<vmem>>, vector<1x384x128xbf16>
    %2 = vector.shape_cast %1 : vector<1x384x128xbf16> to vector<384x128xbf16>
    %cst = arith.constant dense<0.000000e+00> : vector<256x128xf32>
    %3 = tpu.matmul %0, %2, %cst {dimension_numbers = #tpu.dot_dimension_numbers<[1], [0], [0], [1], [0, 0, 1, 1], [], []>} : vector<256x384xbf16>, vector<384x128xbf16>, vector<256x128xf32> -> vector<256x128xf32>
    %c0_4 = arith.constant 0 : index
    %c0_5 = arith.constant 0 : index
    %c0_6 = arith.constant 0 : index
    %4 = vector.load %arg4[%c0_4, %c0_5, %c0_6] : memref<1x1x128xf32, #tpu.memory_space<vmem>>, vector<1x1x128xf32>
    %5 = vector.shape_cast %4 : vector<1x1x128xf32> to vector<1x128xf32>
    %6 = vector.broadcast %5 : vector<1x128xf32> to vector<256x128xf32>
    %7 = arith.addf %3, %6 : vector<256x128xf32>
    %cst_7 = arith.constant 0.000000e+00 : f32
    %8 = vector.broadcast %cst_7 : f32 to vector<256x128xf32>
    %9 = arith.maximumf %7, %8 : vector<256x128xf32>
    %10 = arith.truncf %9 : vector<256x128xf32> to vector<256x128xbf16>
    %c0_8 = arith.constant 0 : index
    %c0_9 = arith.constant 0 : index
    %c0_10 = arith.constant 0 : index
    %11 = vector.load %arg5[%c0_8, %c0_9, %c0_10] : memref<1x128x128xbf16, #tpu.memory_space<vmem>>, vector<1x128x128xbf16>
    %12 = vector.shape_cast %11 : vector<1x128x128xbf16> to vector<128x128xbf16>
    %cst_11 = arith.constant dense<0.000000e+00> : vector<256x128xf32>
    %13 = tpu.matmul %10, %12, %cst_11 {dimension_numbers = #tpu.dot_dimension_numbers<[1], [0], [0], [1], [0, 0, 1, 1], [], []>} : vector<256x128xbf16>, vector<128x128xbf16>, vector<256x128xf32> -> vector<256x128xf32>
    %c0_12 = arith.constant 0 : index
    %c0_13 = arith.constant 0 : index
    %c0_14 = arith.constant 0 : index
    %14 = vector.load %arg6[%c0_12, %c0_13, %c0_14] : memref<1x1x128xf32, #tpu.memory_space<vmem>>, vector<1x1x128xf32>
    %15 = vector.shape_cast %14 : vector<1x1x128xf32> to vector<1x128xf32>
    %16 = vector.broadcast %15 : vector<1x128xf32> to vector<256x128xf32>
    %17 = arith.addf %13, %16 : vector<256x128xf32>
    %cst_15 = arith.constant 0.000000e+00 : f32
    %18 = vector.broadcast %cst_15 : f32 to vector<256x128xf32>
    %19 = arith.maximumf %17, %18 : vector<256x128xf32>
    %20 = arith.truncf %19 : vector<256x128xf32> to vector<256x128xbf16>
    %c0_16 = arith.constant 0 : index
    %c0_17 = arith.constant 0 : index
    %c0_18 = arith.constant 0 : index
    %21 = vector.load %arg7[%c0_16, %c0_17, %c0_18] : memref<1x128x128xbf16, #tpu.memory_space<vmem>>, vector<1x128x128xbf16>
    %22 = vector.shape_cast %21 : vector<1x128x128xbf16> to vector<128x128xbf16>
    %cst_19 = arith.constant dense<0.000000e+00> : vector<256x128xf32>
    %23 = tpu.matmul %20, %22, %cst_19 {dimension_numbers = #tpu.dot_dimension_numbers<[1], [0], [0], [1], [0, 0, 1, 1], [], []>} : vector<256x128xbf16>, vector<128x128xbf16>, vector<256x128xf32> -> vector<256x128xf32>
    %c0_20 = arith.constant 0 : index
    %c0_21 = arith.constant 0 : index
    %c0_22 = arith.constant 0 : index
    %24 = vector.load %arg8[%c0_20, %c0_21, %c0_22] : memref<1x1x128xf32, #tpu.memory_space<vmem>>, vector<1x1x128xf32>
    %25 = vector.shape_cast %24 : vector<1x1x128xf32> to vector<1x128xf32>
    %26 = vector.broadcast %25 : vector<1x128xf32> to vector<256x128xf32>
    %27 = arith.addf %23, %26 : vector<256x128xf32>
    %c0_23 = arith.constant 0 : index
    %c0_24 = arith.constant 0 : index
    %28 = vector.load %arg9[%c0_23, %c0_24] : memref<256x128xf32, #tpu.memory_space<vmem>>, vector<256x128xf32>
    tpu.vector_store %arg9[%c0_23, %c0_24], %27 {strides = array<i32>} : memref<256x128xf32, #tpu.memory_space<vmem>>, vector<256x128xf32>,
    return
  }
  func.func @transform_0(%arg0: i32, %arg1: memref<3xi32, #tpu.memory_space<smem>>) -> (i32, i32) {
    %c0_i32 = arith.constant 0 : i32
    %c0_i32_0 = arith.constant 0 : i32
    return %arg0, %c0_i32 : i32, i32
  }
  func.func @transform_1(%arg0: i32, %arg1: memref<3xi32, #tpu.memory_space<smem>>) -> (i32, i32, i32) {
    %0 = arith.index_cast %arg0 : i32 to index
    %1 = memref.load %arg1[%0] : memref<3xi32, #tpu.memory_space<smem>>
    %c0_i32 = arith.constant 0 : i32
    %c0_i32_0 = arith.constant 0 : i32
    %c0_i32_1 = arith.constant 0 : i32
    return %1, %c0_i32, %c0_i32_0 : i32, i32, i32
  }
  func.func @transform_2(%arg0: i32, %arg1: memref<3xi32, #tpu.memory_space<smem>>) -> (i32, i32, i32) {
    %0 = arith.index_cast %arg0 : i32 to index
    %1 = memref.load %arg1[%0] : memref<3xi32, #tpu.memory_space<smem>>
    %c0_i32 = arith.constant 0 : i32
    %c0_i32_0 = arith.constant 0 : i32
    %c0_i32_1 = arith.constant 0 : i32
    return %1, %c0_i32, %c0_i32_0 : i32, i32, i32
  }
  func.func @transform_3(%arg0: i32, %arg1: memref<3xi32, #tpu.memory_space<smem>>) -> (i32, i32, i32) {
    %0 = arith.index_cast %arg0 : i32 to index
    %1 = memref.load %arg1[%0] : memref<3xi32, #tpu.memory_space<smem>>
    %c0_i32 = arith.constant 0 : i32
    %c0_i32_0 = arith.constant 0 : i32
    %c0_i32_1 = arith.constant 0 : i32
    return %1, %c0_i32, %c0_i32_0 : i32, i32, i32
  }
  func.func @transform_4(%arg0: i32, %arg1: memref<3xi32, #tpu.memory_space<smem>>) -> (i32, i32, i32) {
    %0 = arith.index_cast %arg0 : i32 to index
    %1 = memref.load %arg1[%0] : memref<3xi32, #tpu.memory_space<smem>>
    %c0_i32 = arith.constant 0 : i32
    %c0_i32_0 = arith.constant 0 : i32
    %c0_i32_1 = arith.constant 0 : i32
    return %1, %c0_i32, %c0_i32_0 : i32, i32, i32
  }
  func.func @transform_5(%arg0: i32, %arg1: memref<3xi32, #tpu.memory_space<smem>>) -> (i32, i32, i32) {
    %0 = arith.index_cast %arg0 : i32 to index
    %1 = memref.load %arg1[%0] : memref<3xi32, #tpu.memory_space<smem>>
    %c0_i32 = arith.constant 0 : i32
    %c0_i32_0 = arith.constant 0 : i32
    %c0_i32_1 = arith.constant 0 : i32
    return %1, %c0_i32, %c0_i32_0 : i32, i32, i32
  }
  func.func @transform_6(%arg0: i32, %arg1: memref<3xi32, #tpu.memory_space<smem>>) -> (i32, i32, i32) {
    %0 = arith.index_cast %arg0 : i32 to index
    %1 = memref.load %arg1[%0] : memref<3xi32, #tpu.memory_space<smem>>
    %c0_i32 = arith.constant 0 : i32
    %c0_i32_0 = arith.constant 0 : i32
    %c0_i32_1 = arith.constant 0 : i32
    return %1, %c0_i32, %c0_i32_0 : i32, i32, i32
  }
  func.func @transform_7(%arg0: i32, %arg1: memref<3xi32, #tpu.memory_space<smem>>) -> (i32, i32) {
    %c0_i32 = arith.constant 0 : i32
    %c0_i32_0 = arith.constant 0 : i32
    return %arg0, %c0_i32 : i32, i32
  }
}

</mosaic_0001>

<llo_original>
// kernel: pseudo_graph_net_block.1
$region0: #{pseudo_graph_net_block.1}
  #allocation0 [shape = 'u32[]', space=smem, size = 0x4, offset = 0x4, fixed_abs, tag = 'smem constant byte address 0x4 - core index']
  #allocation1 [shape = 'u32[144,128]{1,0:T(1,128)}', space=vmem, size = 0x12000, scoped, tag = 'internal scratch']
  #allocation2 [shape = 's32[1]{0}', space=sflag, size = 0x4, scoped, tag = 'scoped memory for pseudo_graph_net_block.1']
  #allocation3 [shape = 'u8[512]{0}', space=smem, size = 0x200, scoped, tag = 'prefetched SMEM operand 0']
  %s0 = inlined_call_operand.vmem [shape: s32[3], index: 0, kind: input, shape index: {}]
  %s1 = inlined_call_operand.vmem [shape: bf16[768,384], index: 1, kind: input, shape index: {}]
  %s2 = inlined_call_operand.vmem [shape: bf16[3,384,128], index: 2, kind: input, shape index: {}]
  %s3 = inlined_call_operand.vmem [shape: f32[3,1,128], index: 3, kind: input, shape index: {}]
  %s4 = inlined_call_operand.vmem [shape: bf16[3,128,128], index: 4, kind: input, shape index: {}]
  %s5 = inlined_call_operand.vmem [shape: f32[3,1,128], index: 5, kind: input, shape index: {}]
  %s6 = inlined_call_operand.vmem [shape: bf16[3,128,128], index: 6, kind: input, shape index: {}]
  %s7 = inlined_call_operand.vmem [shape: f32[3,1,128], index: 7, kind: input, shape index: {}]
  %s8 = inlined_call_operand.vmem [shape: f32[768,128], index: 8, kind: output, shape index: {}]
  %s9 = sld [smem:[#allocation0]]
  $region61: #{pseudo_graph_net_block.1} parent=0
    _
  %s11 = ssub.s32 1, %s9
  %s12 = scalar_select 0, %s11, %s9
  %s13 = sshll.u32 %s0, 4
  %s14 = int_to_ptr.vmem [resolvable:$true] %s13
  %16 = dma.vmem_to_smem %s14, 16, [#allocation3], [#allocation2]
  %17 = dma.done [#allocation2], 16
  %18 = sfence
  loop: start=0, step=1, limit=5
  $region2: #{pseudo_graph_net_block.1} parent=0 // loop_pre_header
    _
  $region3: #{pseudo_graph_net_block.1} parent=0 // loop_header
    %s20 = sphi 0, %s24
    %p21 = scmp.ge.s32.totalorder %s20, 5
    %s30 = sphi 0, %s32
    %s33 = sphi 0, %s30
    %s34 = sphi 0, %s33
    %s50 = sphi 0, %s34
    %s58 = sphi 0, %s60
    %s61 = sphi 0, %s58
    %s62 = sphi 0, %s61
    %s78 = sphi 0, %s62
    %s86 = sphi 0, %s88
    %s89 = sphi 0, %s86
    %s90 = sphi 0, %s89
    %s106 = sphi 0, %s90
    %s114 = sphi 0, %s116
    %s117 = sphi 0, %s114
    %s118 = sphi 0, %s117
    %s134 = sphi 0, %s118
    %s142 = sphi 0, %s144
    %s145 = sphi 0, %s142
    %s146 = sphi 0, %s145
    %s162 = sphi 0, %s146
    %s170 = sphi 0, %s172
    %s173 = sphi 0, %s170
    %s174 = sphi 0, %s173
    %s190 = sphi 0, %s174
    %s198 = sphi 0, %s200
    %s201 = sphi 0, %s198
    %s202 = sphi 0, %s201
    %s218 = sphi 0, %s202
    %s224 = sphi 0, %s226
    %s227 = sphi 0, %s224
    %s228 = sphi 0, %s227
    %s244 = sphi 0, %s228
  $region4: #{pseudo_graph_net_block.1} parent=0 // loop_header_branch
    %23 = sbr.rel (%p21) target = $region8
  $region5: #{pseudo_graph_net_block.1} parent=0 // loop_body
    %s25 = ssub.s32 %s20, 1
    %s26 = ssub.s32 %s20, 2
    %s27 = sadd.s32 %s20, 1
    %s28 = ssub.s32 %s20, %s27
    %p29 = scmp.eq.s32.totalorder %s28, 0
    %s31 = sadd.s32 %s30, 1
    %s32 = scalar_select %p29, %s30, %s31
    %p35 = pneg %p29
    %p36 = scmp.eq.s32.totalorder %s20, 2
    %p37 = por %p35, %p36
    %p38 = scmp.ne.s32.totalorder %s30, %s33
    %p39 = scmp.eq.s32.totalorder %s20, 0
    %p40 = por %p38, %p39
    %p41 = scmp.ne.s32.totalorder %s30, %s33
    %p42 = scmp.eq.s32.totalorder %s25, 2
    %p43 = por %p41, %p42
    %p44 = scmp.ne.s32.totalorder %s33, %s34
    %p45 = scmp.eq.s32.totalorder %s25, 0
    %p46 = por %p44, %p45
    %p47 = scmp.ne.s32.totalorder %s33, %s34
    %p48 = scmp.eq.s32.totalorder %s26, 2
    %p49 = por %p47, %p48
    %p51 = scmp.ne.s32.totalorder %s34, %s50
    %p52 = scmp.eq.s32.totalorder %s26, 0
    %p53 = por %p51, %p52
    %s54 = sld [smem:[#allocation3 + %s20]]
    %s55 = sld [smem:[#allocation3 + %s27]]
    %s56 = ssub.s32 %s54, %s55
    %p57 = scmp.eq.s32.totalorder %s56, 0
    %s59 = sadd.s32 %s58, 1
    %s60 = scalar_select %p57, %s58, %s59
    %p63 = pneg %p57
    %p64 = scmp.eq.s32.totalorder %s20, 2
    %p65 = por %p63, %p64
    %p66 = scmp.ne.s32.totalorder %s58, %s61
    %p67 = scmp.eq.s32.totalorder %s20, 0
    %p68 = por %p66, %p67
    %p69 = scmp.ne.s32.totalorder %s58, %s61
    %p70 = scmp.eq.s32.totalorder %s25, 2
    %p71 = por %p69, %p70
    %p72 = scmp.ne.s32.totalorder %s61, %s62
    %p73 = scmp.eq.s32.totalorder %s25, 0
    %p74 = por %p72, %p73
    %p75 = scmp.ne.s32.totalorder %s61, %s62
    %p76 = scmp.eq.s32.totalorder %s26, 2
    %p77 = por %p75, %p76
    %p79 = scmp.ne.s32.totalorder %s62, %s78
    %p80 = scmp.eq.s32.totalorder %s26, 0
    %p81 = por %p79, %p80
    %s82 = sld [smem:[#allocation3 + %s20]]
    %s83 = sld [smem:[#allocation3 + %s27]]
    %s84 = ssub.s32 %s82, %s83
    %p85 = scmp.eq.s32.totalorder %s84, 0
    %s87 = sadd.s32 %s86, 1
    %s88 = scalar_select %p85, %s86, %s87
    %p91 = pneg %p85
    %p92 = scmp.eq.s32.totalorder %s20, 2
    %p93 = por %p91, %p92
    %p94 = scmp.ne.s32.totalorder %s86, %s89
    %p95 = scmp.eq.s32.totalorder %s20, 0
    %p96 = por %p94, %p95
    %p97 = scmp.ne.s32.totalorder %s86, %s89
    %p98 = scmp.eq.s32.totalorder %s25, 2
    %p99 = por %p97, %p98
    %p100 = scmp.ne.s32.totalorder %s89, %s90
    %p101 = scmp.eq.s32.totalorder %s25, 0
    %p102 = por %p100, %p101
    %p103 = scmp.ne.s32.totalorder %s89, %s90
    %p104 = scmp.eq.s32.totalorder %s26, 2
    %p105 = por %p103, %p104
    %p107 = scmp.ne.s32.totalorder %s90, %s106
    %p108 = scmp.eq.s32.totalorder %s26, 0
    %p109 = por %p107, %p108
    %s110 = sld [smem:[#allocation3 + %s20]]
    %s111 = sld [smem:[#allocation3 + %s27]]
    %s112 = ssub.s32 %s110, %s111
    %p113 = scmp.eq.s32.totalorder %s112, 0
    %s115 = sadd.s32 %s114, 1
    %s116 = scalar_select %p113, %s114, %s115
    %p119 = pneg %p113
    %p120 = scmp.eq.s32.totalorder %s20, 2
    %p121 = por %p119, %p120
    %p122 = scmp.ne.s32.totalorder %s114, %s117
    %p123 = scmp.eq.s32.totalorder %s20, 0
    %p124 = por %p122, %p123
    %p125 = scmp.ne.s32.totalorder %s114, %s117
    %p126 = scmp.eq.s32.totalorder %s25, 2
    %p127 = por %p125, %p126
    %p128 = scmp.ne.s32.totalorder %s117, %s118
    %p129 = scmp.eq.s32.totalorder %s25, 0
    %p130 = por %p128, %p129
    %p131 = scmp.ne.s32.totalorder %s117, %s118
    %p132 = scmp.eq.s32.totalorder %s26, 2
    %p133 = por %p131, %p132
    %p135 = scmp.ne.s32.totalorder %s118, %s134
    %p136 = scmp.eq.s32.totalorder %s26, 0
    %p137 = por %p135, %p136
    %s138 = sld [smem:[#allocation3 + %s20]]
    %s139 = sld [smem:[#allocation3 + %s27]]
    %s140 = ssub.s32 %s138, %s139
    %p141 = scmp.eq.s32.totalorder %s140, 0
    %s143 = sadd.s32 %s142, 1
    %s144 = scalar_select %p141, %s142, %s143
    %p147 = pneg %p141
    %p148 = scmp.eq.s32.totalorder %s20, 2
    %p149 = por %p147, %p148
    %p150 = scmp.ne.s32.totalorder %s142, %s145
    %p151 = scmp.eq.s32.totalorder %s20, 0
    %p152 = por %p150, %p151
    %p153 = scmp.ne.s32.totalorder %s142, %s145
    %p154 = scmp.eq.s32.totalorder %s25, 2
    %p155 = por %p153, %p154
    %p156 = scmp.ne.s32.totalorder %s145, %s146
    %p157 = scmp.eq.s32.totalorder %s25, 0
    %p158 = por %p156, %p157
    %p159 = scmp.ne.s32.totalorder %s145, %s146
    %p160 = scmp.eq.s32.totalorder %s26, 2
    %p161 = por %p159, %p160
    %p163 = scmp.ne.s32.totalorder %s146, %s162
    %p164 = scmp.eq.s32.totalorder %s26, 0
    %p165 = por %p163, %p164
    %s166 = sld [smem:[#allocation3 + %s20]]
    %s167 = sld [smem:[#allocation3 + %s27]]
    %s168 = ssub.s32 %s166, %s167
    %p169 = scmp.eq.s32.totalorder %s168, 0
    %s171 = sadd.s32 %s170, 1
    %s172 = scalar_select %p169, %s170, %s171
    %p175 = pneg %p169
    %p176 = scmp.eq.s32.totalorder %s20, 2
    %p177 = por %p175, %p176
    %p178 = scmp.ne.s32.totalorder %s170, %s173
    %p179 = scmp.eq.s32.totalorder %s20, 0
    %p180 = por %p178, %p179
    %p181 = scmp.ne.s32.totalorder %s170, %s173
    %p182 = scmp.eq.s32.totalorder %s25, 2
    %p183 = por %p181, %p182
    %p184 = scmp.ne.s32.totalorder %s173, %s174
    %p185 = scmp.eq.s32.totalorder %s25, 0
    %p186 = por %p184, %p185
    %p187 = scmp.ne.s32.totalorder %s173, %s174
    %p188 = scmp.eq.s32.totalorder %s26, 2
    %p189 = por %p187, %p188
    %p191 = scmp.ne.s32.totalorder %s174, %s190
    %p192 = scmp.eq.s32.totalorder %s26, 0
    %p193 = por %p191, %p192
    %s194 = sld [smem:[#allocation3 + %s20]]
    %s195 = sld [smem:[#allocation3 + %s27]]
    %s196 = ssub.s32 %s194, %s195
    %p197 = scmp.eq.s32.totalorder %s196, 0
    %s199 = sadd.s32 %s198, 1
    %s200 = scalar_select %p197, %s198, %s199
    %p203 = pneg %p197
    %p204 = scmp.eq.s32.totalorder %s20, 2
    %p205 = por %p203, %p204
    %p206 = scmp.ne.s32.totalorder %s198, %s201
    %p207 = scmp.eq.s32.totalorder %s20, 0
    %p208 = por %p206, %p207
    %p209 = scmp.ne.s32.totalorder %s198, %s201
    %p210 = scmp.eq.s32.totalorder %s25, 2
    %p211 = por %p209, %p210
    %p212 = scmp.ne.s32.totalorder %s201, %s202
    %p213 = scmp.eq.s32.totalorder %s25, 0
    %p214 = por %p212, %p213
    %p215 = scmp.ne.s32.totalorder %s201, %s202
    %p216 = scmp.eq.s32.totalorder %s26, 2
    %p217 = por %p215, %p216
    %p219 = scmp.ne.s32.totalorder %s202, %s218
    %p220 = scmp.eq.s32.totalorder %s26, 0
    %p221 = por %p219, %p220
    %s222 = ssub.s32 %s20, %s27
    %p223 = scmp.eq.s32.totalorder %s222, 0
    %s225 = sadd.s32 %s224, 1
    %s226 = scalar_select %p223, %s224, %s225
    %p229 = pneg %p223
    %p230 = scmp.eq.s32.totalorder %s20, 2
    %p231 = por %p229, %p230
    %p232 = scmp.ne.s32.totalorder %s224, %s227
    %p233 = scmp.eq.s32.totalorder %s20, 0
    %p234 = por %p232, %p233
    %p235 = scmp.ne.s32.totalorder %s224, %s227
    %p236 = scmp.eq.s32.totalorder %s25, 2
    %p237 = por %p235, %p236
    %p238 = scmp.ne.s32.totalorder %s227, %s228
    %p239 = scmp.eq.s32.totalorder %s25, 0
    %p240 = por %p238, %p239
    %p241 = scmp.ne.s32.totalorder %s227, %s228
    %p242 = scmp.eq.s32.totalorder %s26, 2
    %p243 = por %p241, %p242
    %p245 = scmp.ne.s32.totalorder %s228, %s244
    %p246 = scmp.eq.s32.totalorder %s26, 0
    %p247 = por %p245, %p246
    %p248 = scmp.le.s32.totalorder 1, %s20
    %p249 = scmp.lt.s32.totalorder %s20, 4
    %p250 = pnand %p248, %p249
    %p251 = pneg %p250
    // Predicated region
    $region9: #{pseudo_graph_net_block.1} parent=5 // pred_check
      _
    $region10: #{pseudo_graph_net_block.1} parent=5 // pred_check_branch
      %253 = sbr.rel (%p250) target = $region12
    $region11: #{pseudo_graph_net_block.1} parent=5 // pred_region
      %s254 = ssub.s32 %s20, 1
    $region12: #{pseudo_graph_net_block.1} parent=5 // pred_fallthru
      _
    %p255 = scmp.lt.s32.totalorder %s20, 3
    // Predicated region
    $region13: #{pseudo_graph_net_block.1} parent=5 // pred_check
      %p256 = pneg %p255
    $region14: #{pseudo_graph_net_block.1} parent=5 // pred_check_branch
      %258 = sbr.rel (%p256) target = $region16
    $region15: #{pseudo_graph_net_block.1} parent=5 // pred_region
      // Predicated region
      $region17: #{pseudo_graph_net_block.1} parent=15 // pred_check
        %p259 = pneg %p40
      $region18: #{pseudo_graph_net_block.1} parent=15 // pred_check_branch
        %261 = sbr.rel (%p259) target = $region20
      $region19: #{pseudo_graph_net_block.1} parent=15 // pred_region
        %s262 = smul.u32 32, %s20
        %p263 = scmp.lt.s32.totalorder %s262, 95
        %s264 = scalar_select %p263, %s262, 95
        %s265 = smul.addr %s264, 3
        %s266 = smul.addr %s265, 4
        %s267 = scalar_lea.vmem %s1, %s266
        %s268 = smul.u32 32, %s20
      $region20: #{pseudo_graph_net_block.1} parent=15 // pred_fallthru
        _
      // Predicated region
      $region21: #{pseudo_graph_net_block.1} parent=15 // pred_check
        %p269 = pneg %p68
      $region22: #{pseudo_graph_net_block.1} parent=15 // pred_check_branch
        %271 = sbr.rel (%p269) target = $region24
      $region23: #{pseudo_graph_net_block.1} parent=15 // pred_region
        %s272 = sld [smem:[#allocation3 + %s20]]
        %p273 = scmp.lt.s32.totalorder %s272, 2
        %s274 = scalar_select %p273, %s272, 2
        %s275 = smul.addr %s274, 48
        %s276 = smul.addr %s275, 4
        %s277 = scalar_lea.vmem %s2, %s276
        %s278 = sld [smem:[#allocation3 + %s20]]
      $region24: #{pseudo_graph_net_block.1} parent=15 // pred_fallthru
        _
      // Predicated region
      $region25: #{pseudo_graph_net_block.1} parent=15 // pred_check
        %p279 = pneg %p96
      $region26: #{pseudo_graph_net_block.1} parent=15 // pred_check_branch
        %281 = sbr.rel (%p279) target = $region28
      $region27: #{pseudo_graph_net_block.1} parent=15 // pred_region
        %s282 = sld [smem:[#allocation3 + %s20]]
        %p283 = scmp.lt.s32.totalorder %s282, 2
        %s284 = scalar_select %p283, %s282, 2
        %s285 = scalar_lea.vmem %s3, %s284
        %s286 = sld [smem:[#allocation3 + %s20]]
      $region28: #{pseudo_graph_net_block.1} parent=15 // pred_fallthru
        _
      // Predicated region
      $region29: #{pseudo_graph_net_block.1} parent=15 // pred_check
        %p287 = pneg %p124
      $region30: #{pseudo_graph_net_block.1} parent=15 // pred_check_branch
        %289 = sbr.rel (%p287) target = $region32
      $region31: #{pseudo_graph_net_block.1} parent=15 // pred_region
        %s290 = sld [smem:[#allocation3 + %s20]]
        %p291 = scmp.lt.s32.totalorder %s290, 2
        %s292 = scalar_select %p291, %s290, 2
        %s293 = smul.addr %s292, 16
        %s294 = smul.addr %s293, 4
        %s295 = scalar_lea.vmem %s4, %s294
        %s296 = sld [smem:[#allocation3 + %s20]]
      $region32: #{pseudo_graph_net_block.1} parent=15 // pred_fallthru
        _
      // Predicated region
      $region33: #{pseudo_graph_net_block.1} parent=15 // pred_check
        %p297 = pneg %p152
      $region34: #{pseudo_graph_net_block.1} parent=15 // pred_check_branch
        %299 = sbr.rel (%p297) target = $region36
      $region35: #{pseudo_graph_net_block.1} parent=15 // pred_region
        %s300 = sld [smem:[#allocation3 + %s20]]
        %p301 = scmp.lt.s32.totalorder %s300, 2
        %s302 = scalar_select %p301, %s300, 2
        %s303 = scalar_lea.vmem %s5, %s302
        %s304 = sld [smem:[#allocation3 + %s20]]
      $region36: #{pseudo_graph_net_block.1} parent=15 // pred_fallthru
        _
      // Predicated region
      $region37: #{pseudo_graph_net_block.1} parent=15 // pred_check
        %p305 = pneg %p180
      $region38: #{pseudo_graph_net_block.1} parent=15 // pred_check_branch
        %307 = sbr.rel (%p305) target = $region40
      $region39: #{pseudo_graph_net_block.1} parent=15 // pred_region
        %s308 = sld [smem:[#allocation3 + %s20]]
        %p309 = scmp.lt.s32.totalorder %s308, 2
        %s310 = scalar_select %p309, %s308, 2
        %s311 = smul.addr %s310, 16
        %s312 = smul.addr %s311, 4
        %s313 = scalar_lea.vmem %s6, %s312
        %s314 = sld [smem:[#allocation3 + %s20]]
      $region40: #{pseudo_graph_net_block.1} parent=15 // pred_fallthru
        _
      // Predicated region
      $region41: #{pseudo_graph_net_block.1} parent=15 // pred_check
        %p315 = pneg %p208
      $region42: #{pseudo_graph_net_block.1} parent=15 // pred_check_branch
        %317 = sbr.rel (%p315) target = $region44
      $region43: #{pseudo_graph_net_block.1} parent=15 // pred_region
        %s318 = sld [smem:[#allocation3 + %s20]]
        %p319 = scmp.lt.s32.totalorder %s318, 2
        %s320 = scalar_select %p319, %s318, 2
        %s321 = scalar_lea.vmem %s7, %s320
        %s322 = sld [smem:[#allocation3 + %s20]]
      $region44: #{pseudo_graph_net_block.1} parent=15 // pred_fallthru
        _
    $region16: #{pseudo_graph_net_block.1} parent=5 // pred_fallthru
      _
    %p323 = scmp.le.s32.totalorder 1, %s20
    %p324 = scmp.lt.s32.totalorder %s20, 4
    %p325 = pnand %p323, %p324
    %p326 = pneg %p325
    // Predicated region
    $region45: #{pseudo_graph_net_block.1} parent=5 // pred_check
      _
    $region46: #{pseudo_graph_net_block.1} parent=5 // pred_check_branch
      %328 = sbr.rel (%p325) target = $region48
    $region47: #{pseudo_graph_net_block.1} parent=5 // pred_region
      %s329 = ssub.s32 %s20, 1
      %s330 = smul.u32 32, %s25
      %p331 = scmp.lt.s32.totalorder %s330, 95
      %s332 = scalar_select %p331, %s330, 95
      %s333 = smul.addr %s332, 3
      %s334 = smul.addr %s333, 4
      %s335 = scalar_lea.vmem %s1, %s334
      %p336 = pneg %p46
      %p337 = pneg %p43
      %s338 = sld [smem:[#allocation3 + %s25]]
      %p339 = scmp.lt.s32.totalorder %s338, 2
      %s340 = scalar_select %p339, %s338, 2
      %s341 = smul.addr %s340, 48
      %s342 = smul.addr %s341, 4
      %s343 = scalar_lea.vmem %s2, %s342
      %p344 = pneg %p74
      %p345 = pneg %p71
      %s346 = sld [smem:[#allocation3 + %s25]]
      %p347 = scmp.lt.s32.totalorder %s346, 2
      %s348 = scalar_select %p347, %s346, 2
      %s349 = scalar_lea.vmem %s3, %s348
      %p350 = pneg %p102
      %p351 = pneg %p99
      %s352 = sld [smem:[#allocation3 + %s25]]
      %p353 = scmp.lt.s32.totalorder %s352, 2
      %s354 = scalar_select %p353, %s352, 2
      %s355 = smul.addr %s354, 16
      %s356 = smul.addr %s355, 4
      %s357 = scalar_lea.vmem %s4, %s356
      %p358 = pneg %p130
      %p359 = pneg %p127
      %s360 = sld [smem:[#allocation3 + %s25]]
      %p361 = scmp.lt.s32.totalorder %s360, 2
      %s362 = scalar_select %p361, %s360, 2
      %s363 = scalar_lea.vmem %s5, %s362
      %p364 = pneg %p158
      %p365 = pneg %p155
      %s366 = sld [smem:[#allocation3 + %s25]]
      %p367 = scmp.lt.s32.totalorder %s366, 2
      %s368 = scalar_select %p367, %s366, 2
      %s369 = smul.addr %s368, 16
      %s370 = smul.addr %s369, 4
      %s371 = scalar_lea.vmem %s6, %s370
      %p372 = pneg %p186
      %p373 = pneg %p183
      %s374 = sld [smem:[#allocation3 + %s25]]
      %p375 = scmp.lt.s32.totalorder %s374, 2
      %s376 = scalar_select %p375, %s374, 2
      %s377 = scalar_lea.vmem %s7, %s376
      %p378 = pneg %p214
      %p379 = pneg %p211
      %p380 = pneg %p240
      %p381 = pneg %p237
      %s382 = smul.u32 32, %s25
      %p383 = scmp.lt.s32.totalorder %s382, 95
      %s384 = scalar_select %p383, %s382, 95
      %s385 = smul.addr %s384, 8
      %s386 = scalar_lea.vmem %s8, %s385
      %s387 = smul.u32 32, %s25
      %p388 = scmp.lt.s32.totalorder %s387, 95
      %s389 = scalar_select %p388, %s387, 95
      %s390 = smul.addr %s389, 3
      %s391 = smul.addr %s390, 4
      %s392 = scalar_lea.vmem %s1, %s391
      %s393 = smul.u32 32, %s25
      %s394 = sld [smem:[#allocation3 + %s25]]
      %p395 = scmp.lt.s32.totalorder %s394, 2
      %s396 = scalar_select %p395, %s394, 2
      %s397 = smul.addr %s396, 48
      %s398 = smul.addr %s397, 4
      %s399 = scalar_lea.vmem %s2, %s398
      %s400 = sld [smem:[#allocation3 + %s25]]
      %s401 = sld [smem:[#allocation3 + %s25]]
      %p402 = scmp.lt.s32.totalorder %s401, 2
      %s403 = scalar_select %p402, %s401, 2
      %s404 = scalar_lea.vmem %s3, %s403
      %s405 = sld [smem:[#allocation3 + %s25]]
      %s406 = sld [smem:[#allocation3 + %s25]]
      %p407 = scmp.lt.s32.totalorder %s406, 2
      %s408 = scalar_select %p407, %s406, 2
      %s409 = smul.addr %s408, 16
      %s410 = smul.addr %s409, 4
      %s411 = scalar_lea.vmem %s4, %s410
      %s412 = sld [smem:[#allocation3 + %s25]]
      %s413 = sld [smem:[#allocation3 + %s25]]
      %p414 = scmp.lt.s32.totalorder %s413, 2
      %s415 = scalar_select %p414, %s413, 2
      %s416 = scalar_lea.vmem %s5, %s415
      %s417 = sld [smem:[#allocation3 + %s25]]
      %s418 = sld [smem:[#allocation3 + %s25]]
      %p419 = scmp.lt.s32.totalorder %s418, 2
      %s420 = scalar_select %p419, %s418, 2
      %s421 = smul.addr %s420, 16
      %s422 = smul.addr %s421, 4
      %s423 = scalar_lea.vmem %s6, %s422
      %s424 = sld [smem:[#allocation3 + %s25]]
      %s425 = sld [smem:[#allocation3 + %s25]]
      %p426 = scmp.lt.s32.totalorder %s425, 2
      %s427 = scalar_select %p426, %s425, 2
      %s428 = scalar_lea.vmem %s7, %s427
      %s429 = sld [smem:[#allocation3 + %s25]]
      %s430 = smul.u32 32, %s25
      %p431 = scmp.lt.s32.totalorder %s430, 95
      %s432 = scalar_select %p431, %s430, 95
      %s433 = smul.addr %s432, 8
      %s434 = scalar_lea.vmem %s8, %s433
      %s435 = smul.u32 32, %s25
      %v437 = vld [vmem:[%s392] sm:$0xff]
      %v438 = vld [vmem:[%s392 + $0x8] sm:$0xf]
      %v439 = vld [vmem:[%s392 + $0xc] sm:$0xff]
      %v440 = vld [vmem:[%s392 + $0x14] sm:$0xf]
      %v441 = vld [vmem:[%s392 + $0x18] sm:$0xff]
      %v442 = vld [vmem:[%s392 + $0x20] sm:$0xf]
      %v443 = vld [vmem:[%s392 + $0x24] sm:$0xff]
      %v444 = vld [vmem:[%s392 + $0x2c] sm:$0xf]
      %v445 = vld [vmem:[%s392 + $0x30] sm:$0xff]
      %v446 = vld [vmem:[%s392 + $0x38] sm:$0xf]
      %v447 = vld [vmem:[%s392 + $0x3c] sm:$0xff]
      %v448 = vld [vmem:[%s392 + $0x44] sm:$0xf]
      %v449 = vld [vmem:[%s392 + $0x48] sm:$0xff]
      %v450 = vld [vmem:[%s392 + $0x50] sm:$0xf]
      %v451 = vld [vmem:[%s392 + $0x54] sm:$0xff]
      %v452 = vld [vmem:[%s392 + $0x5c] sm:$0xf]
      %v453 = vld [vmem:[%s392 + $0x60] sm:$0xff]
      %v454 = vld [vmem:[%s392 + $0x68] sm:$0xf]
      %v455 = vld [vmem:[%s392 + $0x6c] sm:$0xff]
      %v456 = vld [vmem:[%s392 + $0x74] sm:$0xf]
      %v457 = vld [vmem:[%s392 + $0x78] sm:$0xff]
      %v458 = vld [vmem:[%s392 + $0x80] sm:$0xf]
      %v459 = vld [vmem:[%s392 + $0x84] sm:$0xff]
      %v460 = vld [vmem:[%s392 + $0x8c] sm:$0xf]
      %v461 = vld [vmem:[%s392 + $0x90] sm:$0xff]
      %v462 = vld [vmem:[%s392 + $0x98] sm:$0xf]
      %v463 = vld [vmem:[%s392 + $0x9c] sm:$0xff]
      %v464 = vld [vmem:[%s392 + $0xa4] sm:$0xf]
      %v465 = vld [vmem:[%s392 + $0xa8] sm:$0xff]
      %v466 = vld [vmem:[%s392 + $0xb0] sm:$0xf]
      %v467 = vld [vmem:[%s392 + $0xb4] sm:$0xff]
      %v468 = vld [vmem:[%s392 + $0xbc] sm:$0xf]
      %v469 = vld [vmem:[%s392 + $0xc0] sm:$0xff]
      %v470 = vld [vmem:[%s392 + $0xc8] sm:$0xf]
      %v471 = vld [vmem:[%s392 + $0xcc] sm:$0xff]
      %v472 = vld [vmem:[%s392 + $0xd4] sm:$0xf]
      %v473 = vld [vmem:[%s392 + $0xd8] sm:$0xff]
      %v474 = vld [vmem:[%s392 + $0xe0] sm:$0xf]
      %v475 = vld [vmem:[%s392 + $0xe4] sm:$0xff]
      %v476 = vld [vmem:[%s392 + $0xec] sm:$0xf]
      %v477 = vld [vmem:[%s392 + $0xf0] sm:$0xff]
      %v478 = vld [vmem:[%s392 + $0xf8] sm:$0xf]
      %v479 = vld [vmem:[%s392 + $0xfc] sm:$0xff]
      %v480 = vld [vmem:[%s392 + $0x104] sm:$0xf]
      %v481 = vld [vmem:[%s392 + $0x108] sm:$0xff]
      %v482 = vld [vmem:[%s392 + $0x110] sm:$0xf]
      %v483 = vld [vmem:[%s392 + $0x114] sm:$0xff]
      %v484 = vld [vmem:[%s392 + $0x11c] sm:$0xf]
      %v485 = vld [vmem:[%s392 + $0x120] sm:$0xff]
      %v486 = vld [vmem:[%s392 + $0x128] sm:$0xf]
      %v487 = vld [vmem:[%s392 + $0x12c] sm:$0xff]
      %v488 = vld [vmem:[%s392 + $0x134] sm:$0xf]
      %v489 = vld [vmem:[%s392 + $0x138] sm:$0xff]
      %v490 = vld [vmem:[%s392 + $0x140] sm:$0xf]
      %v491 = vld [vmem:[%s392 + $0x144] sm:$0xff]
      %v492 = vld [vmem:[%s392 + $0x14c] sm:$0xf]
      %v493 = vld [vmem:[%s392 + $0x150] sm:$0xff]
      %v494 = vld [vmem:[%s392 + $0x158] sm:$0xf]
      %v495 = vld [vmem:[%s392 + $0x15c] sm:$0xff]
      %v496 = vld [vmem:[%s392 + $0x164] sm:$0xf]
      %v497 = vld [vmem:[%s392 + $0x168] sm:$0xff]
      %v498 = vld [vmem:[%s392 + $0x170] sm:$0xf]
      %v499 = vld [vmem:[%s392 + $0x174] sm:$0xff]
      %v500 = vld [vmem:[%s392 + $0x17c] sm:$0xf]
      %v501 = vld [vmem:[%s399] sm:$0xf]
      %v502 = vld [vmem:[%s399 + $0x4] sm:$0xf]
      %v503 = vld [vmem:[%s399 + $0x8] sm:$0xf]
      %v504 = vld [vmem:[%s399 + $0xc] sm:$0xf]
      %v505 = vld [vmem:[%s399 + $0x10] sm:$0xf]
      %v506 = vld [vmem:[%s399 + $0x14] sm:$0xf]
      %v507 = vld [vmem:[%s399 + $0x18] sm:$0xf]
      %v508 = vld [vmem:[%s399 + $0x1c] sm:$0xf]
      %v509 = vld [vmem:[%s399 + $0x20] sm:$0xf]
      %v510 = vld [vmem:[%s399 + $0x24] sm:$0xf]
      %v511 = vld [vmem:[%s399 + $0x28] sm:$0xf]
      %v512 = vld [vmem:[%s399 + $0x2c] sm:$0xf]
      %v513 = vld [vmem:[%s399 + $0x30] sm:$0xf]
      %v514 = vld [vmem:[%s399 + $0x34] sm:$0xf]
      %v515 = vld [vmem:[%s399 + $0x38] sm:$0xf]
      %v516 = vld [vmem:[%s399 + $0x3c] sm:$0xf]
      %v517 = vld [vmem:[%s399 + $0x40] sm:$0xf]
      %v518 = vld [vmem:[%s399 + $0x44] sm:$0xf]
      %v519 = vld [vmem:[%s399 + $0x48] sm:$0xf]
      %v520 = vld [vmem:[%s399 + $0x4c] sm:$0xf]
      %v521 = vld [vmem:[%s399 + $0x50] sm:$0xf]
      %v522 = vld [vmem:[%s399 + $0x54] sm:$0xf]
      %v523 = vld [vmem:[%s399 + $0x58] sm:$0xf]
      %v524 = vld [vmem:[%s399 + $0x5c] sm:$0xf]
      %v525 = vld [vmem:[%s399 + $0x60] sm:$0xf]
      %v526 = vld [vmem:[%s399 + $0x64] sm:$0xf]
      %v527 = vld [vmem:[%s399 + $0x68] sm:$0xf]
      %v528 = vld [vmem:[%s399 + $0x6c] sm:$0xf]
      %v529 = vld [vmem:[%s399 + $0x70] sm:$0xf]
      %v530 = vld [vmem:[%s399 + $0x74] sm:$0xf]
      %v531 = vld [vmem:[%s399 + $0x78] sm:$0xf]
      %v532 = vld [vmem:[%s399 + $0x7c] sm:$0xf]
      %v533 = vld [vmem:[%s399 + $0x80] sm:$0xf]
      %v534 = vld [vmem:[%s399 + $0x84] sm:$0xf]
      %v535 = vld [vmem:[%s399 + $0x88] sm:$0xf]
      %v536 = vld [vmem:[%s399 + $0x8c] sm:$0xf]
      %v537 = vld [vmem:[%s399 + $0x90] sm:$0xf]
      %v538 = vld [vmem:[%s399 + $0x94] sm:$0xf]
      %v539 = vld [vmem:[%s399 + $0x98] sm:$0xf]
      %v540 = vld [vmem:[%s399 + $0x9c] sm:$0xf]
      %v541 = vld [vmem:[%s399 + $0xa0] sm:$0xf]
      %v542 = vld [vmem:[%s399 + $0xa4] sm:$0xf]
      %v543 = vld [vmem:[%s399 + $0xa8] sm:$0xf]
      %v544 = vld [vmem:[%s399 + $0xac] sm:$0xf]
      %v545 = vld [vmem:[%s399 + $0xb0] sm:$0xf]
      %v546 = vld [vmem:[%s399 + $0xb4] sm:$0xf]
      %v547 = vld [vmem:[%s399 + $0xb8] sm:$0xf]
      %v548 = vld [vmem:[%s399 + $0xbc] sm:$0xf]
      %v549 = vld [vmem:[%s404] sm:$0x1]
      %v551 = vlaneseq
      %v552 = vshrl.u32 %v551, 7
      %v553 = vsub.s32 0, %v552
      %v554 = vrot.slane %v549, %v553
      %v620 = vunpack.c.l.b16 %v437
      %v621 = vunpack.c.h.b16 %v437
      %v622 = vunpack.c.l.b16 %v438
      %v623 = vunpack.c.l.b16 %v439
      %v624 = vunpack.c.h.b16 %v439
      %v625 = vunpack.c.l.b16 %v440
      %v626 = vunpack.c.l.b16 %v441
      %v627 = vunpack.c.h.b16 %v441
      %v628 = vunpack.c.l.b16 %v442
      %v629 = vunpack.c.l.b16 %v443
      %v630 = vunpack.c.h.b16 %v443
      %v631 = vunpack.c.l.b16 %v444
      %v632 = vunpack.c.l.b16 %v445
      %v633 = vunpack.c.h.b16 %v445
      %v634 = vunpack.c.l.b16 %v446
      %v635 = vunpack.c.l.b16 %v447
      %v636 = vunpack.c.h.b16 %v447
      %v637 = vunpack.c.l.b16 %v448
      %v638 = vunpack.c.l.b16 %v449
      %v639 = vunpack.c.h.b16 %v449
      %v640 = vunpack.c.l.b16 %v450
      %v641 = vunpack.c.l.b16 %v451
      %v642 = vunpack.c.h.b16 %v451
      %v643 = vunpack.c.l.b16 %v452
      %v644 = vunpack.c.l.b16 %v453
      %v645 = vunpack.c.h.b16 %v453
      %v646 = vunpack.c.l.b16 %v454
      %v647 = vunpack.c.l.b16 %v455
      %v648 = vunpack.c.h.b16 %v455
      %v649 = vunpack.c.l.b16 %v456
      %v650 = vunpack.c.l.b16 %v457
      %v651 = vunpack.c.h.b16 %v457
      %v652 = vunpack.c.l.b16 %v458
      %v653 = vunpack.c.l.b16 %v459
      %v654 = vunpack.c.h.b16 %v459
      %v655 = vunpack.c.l.b16 %v460
      %v656 = vunpack.c.l.b16 %v461
      %v657 = vunpack.c.h.b16 %v461
      %v658 = vunpack.c.l.b16 %v462
      %v659 = vunpack.c.l.b16 %v463
      %v660 = vunpack.c.h.b16 %v463
      %v661 = vunpack.c.l.b16 %v464
      %v662 = vunpack.c.l.b16 %v465
      %v663 = vunpack.c.h.b16 %v465
      %v664 = vunpack.c.l.b16 %v466
      %v665 = vunpack.c.l.b16 %v467
      %v666 = vunpack.c.h.b16 %v467
      %v667 = vunpack.c.l.b16 %v468
      %v668 = vunpack.c.l.b16 %v469
      %v669 = vunpack.c.h.b16 %v469
      %v670 = vunpack.c.l.b16 %v470
      %v671 = vunpack.c.l.b16 %v471
      %v672 = vunpack.c.h.b16 %v471
      %v673 = vunpack.c.l.b16 %v472
      %v674 = vunpack.c.l.b16 %v473
      %v675 = vunpack.c.h.b16 %v473
      %v676 = vunpack.c.l.b16 %v474
      %v677 = vunpack.c.l.b16 %v475
      %v678 = vunpack.c.h.b16 %v475
      %v679 = vunpack.c.l.b16 %v476
      %v680 = vunpack.c.l.b16 %v477
      %v681 = vunpack.c.h.b16 %v477
      %v682 = vunpack.c.l.b16 %v478
      %v683 = vunpack.c.l.b16 %v479
      %v684 = vunpack.c.h.b16 %v479
      %v685 = vunpack.c.l.b16 %v480
      %v686 = vunpack.c.l.b16 %v481
      %v687 = vunpack.c.h.b16 %v481
      %v688 = vunpack.c.l.b16 %v482
      %v689 = vunpack.c.l.b16 %v483
      %v690 = vunpack.c.h.b16 %v483
      %v691 = vunpack.c.l.b16 %v484
      %v692 = vunpack.c.l.b16 %v485
      %v693 = vunpack.c.h.b16 %v485
      %v694 = vunpack.c.l.b16 %v486
      %v695 = vunpack.c.l.b16 %v487
      %v696 = vunpack.c.h.b16 %v487
      %v697 = vunpack.c.l.b16 %v488
      %v698 = vunpack.c.l.b16 %v489
      %v699 = vunpack.c.h.b16 %v489
      %v700 = vunpack.c.l.b16 %v490
      %v701 = vunpack.c.l.b16 %v491
      %v702 = vunpack.c.h.b16 %v491
      %v703 = vunpack.c.l.b16 %v492
      %v704 = vunpack.c.l.b16 %v493
      %v705 = vunpack.c.h.b16 %v493
      %v706 = vunpack.c.l.b16 %v494
      %v707 = vunpack.c.l.b16 %v495
      %v708 = vunpack.c.h.b16 %v495
      %v709 = vunpack.c.l.b16 %v496
      %v710 = vunpack.c.l.b16 %v497
      %v711 = vunpack.c.h.b16 %v497
      %v712 = vunpack.c.l.b16 %v498
      %v713 = vunpack.c.l.b16 %v499
      %v714 = vunpack.c.h.b16 %v499
      %v715 = vunpack.c.l.b16 %v500
      %v716 = vpack.c.b16 %v623, %v620
      %v717 = vpack.c.b16 %v624, %v621
      %v718 = vpack.c.b16 %v625, %v622
      %v719 = vpack.c.b16 %v629, %v626
      %v720 = vpack.c.b16 %v630, %v627
      %v721 = vpack.c.b16 %v631, %v628
      %v722 = vpack.c.b16 %v635, %v632
      %v723 = vpack.c.b16 %v636, %v633
      %v724 = vpack.c.b16 %v637, %v634
      %v725 = vpack.c.b16 %v641, %v638
      %v726 = vpack.c.b16 %v642, %v639
      %v727 = vpack.c.b16 %v643, %v640
      %v728 = vpack.c.b16 %v647, %v644
      %v729 = vpack.c.b16 %v648, %v645
      %v730 = vpack.c.b16 %v649, %v646
      %v731 = vpack.c.b16 %v653, %v650
      %v732 = vpack.c.b16 %v654, %v651
      %v733 = vpack.c.b16 %v655, %v652
      %v734 = vpack.c.b16 %v659, %v656
      %v735 = vpack.c.b16 %v660, %v657
      %v736 = vpack.c.b16 %v661, %v658
      %v737 = vpack.c.b16 %v665, %v662
      %v738 = vpack.c.b16 %v666, %v663
      %v739 = vpack.c.b16 %v667, %v664
      %v740 = vpack.c.b16 %v671, %v668
      %v741 = vpack.c.b16 %v672, %v669
      %v742 = vpack.c.b16 %v673, %v670
      %v743 = vpack.c.b16 %v677, %v674
      %v744 = vpack.c.b16 %v678, %v675
      %v745 = vpack.c.b16 %v679, %v676
      %v746 = vpack.c.b16 %v683, %v680
      %v747 = vpack.c.b16 %v684, %v681
      %v748 = vpack.c.b16 %v685, %v682
      %v749 = vpack.c.b16 %v689, %v686
      %v750 = vpack.c.b16 %v690, %v687
      %v751 = vpack.c.b16 %v691, %v688
      %v752 = vpack.c.b16 %v695, %v692
      %v753 = vpack.c.b16 %v696, %v693
      %v754 = vpack.c.b16 %v697, %v694
      %v755 = vpack.c.b16 %v701, %v698
      %v756 = vpack.c.b16 %v702, %v699
      %v757 = vpack.c.b16 %v703, %v700
      %v758 = vpack.c.b16 %v707, %v704
      %v759 = vpack.c.b16 %v708, %v705
      %v760 = vpack.c.b16 %v709, %v706
      %v761 = vpack.c.b16 %v713, %v710
      %v762 = vpack.c.b16 %v714, %v711
      %v763 = vpack.c.b16 %v715, %v712
      %v860 = vunpack.c.l.b16 %v501
      %v861 = vunpack.c.l.b16 %v502
      %v862 = vunpack.c.l.b16 %v503
      %v863 = vunpack.c.l.b16 %v504
      %v864 = vunpack.c.l.b16 %v505
      %v865 = vunpack.c.l.b16 %v506
      %v866 = vunpack.c.l.b16 %v507
      %v867 = vunpack.c.l.b16 %v508
      %v868 = vunpack.c.l.b16 %v509
      %v869 = vunpack.c.l.b16 %v510
      %v870 = vunpack.c.l.b16 %v511
      %v871 = vunpack.c.l.b16 %v512
      %v872 = vunpack.c.l.b16 %v513
      %v873 = vunpack.c.l.b16 %v514
      %v874 = vunpack.c.l.b16 %v515
      %v875 = vunpack.c.l.b16 %v516
      %v876 = vunpack.c.l.b16 %v517
      %v877 = vunpack.c.l.b16 %v518
      %v878 = vunpack.c.l.b16 %v519
      %v879 = vunpack.c.l.b16 %v520
      %v880 = vunpack.c.l.b16 %v521
      %v881 = vunpack.c.l.b16 %v522
      %v882 = vunpack.c.l.b16 %v523
      %v883 = vunpack.c.l.b16 %v524
      %v884 = vunpack.c.l.b16 %v525
      %v885 = vunpack.c.l.b16 %v526
      %v886 = vunpack.c.l.b16 %v527
      %v887 = vunpack.c.l.b16 %v528
      %v888 = vunpack.c.l.b16 %v529
      %v889 = vunpack.c.l.b16 %v530
      %v890 = vunpack.c.l.b16 %v531
      %v891 = vunpack.c.l.b16 %v532
      %v892 = vunpack.c.l.b16 %v533
      %v893 = vunpack.c.l.b16 %v534
      %v894 = vunpack.c.l.b16 %v535
      %v895 = vunpack.c.l.b16 %v536
      %v896 = vunpack.c.l.b16 %v537
      %v897 = vunpack.c.l.b16 %v538
      %v898 = vunpack.c.l.b16 %v539
      %v899 = vunpack.c.l.b16 %v540
      %v900 = vunpack.c.l.b16 %v541
      %v901 = vunpack.c.l.b16 %v542
      %v902 = vunpack.c.l.b16 %v543
      %v903 = vunpack.c.l.b16 %v544
      %v904 = vunpack.c.l.b16 %v545
      %v905 = vunpack.c.l.b16 %v546
      %v906 = vunpack.c.l.b16 %v547
      %v907 = vunpack.c.l.b16 %v548
      %v908 = vpack.c.b16 %v861, %v860
      %v909 = vpack.c.b16 %v863, %v862
      %v910 = vpack.c.b16 %v865, %v864
      %v911 = vpack.c.b16 %v867, %v866
      %v912 = vpack.c.b16 %v869, %v868
      %v913 = vpack.c.b16 %v871, %v870
      %v914 = vpack.c.b16 %v873, %v872
      %v915 = vpack.c.b16 %v875, %v874
      %v916 = vpack.c.b16 %v877, %v876
      %v917 = vpack.c.b16 %v879, %v878
      %v918 = vpack.c.b16 %v881, %v880
      %v919 = vpack.c.b16 %v883, %v882
      %v920 = vpack.c.b16 %v885, %v884
      %v921 = vpack.c.b16 %v887, %v886
      %v922 = vpack.c.b16 %v889, %v888
      %v923 = vpack.c.b16 %v891, %v890
      %v924 = vpack.c.b16 %v893, %v892
      %v925 = vpack.c.b16 %v895, %v894
      %v926 = vpack.c.b16 %v897, %v896
      %v927 = vpack.c.b16 %v899, %v898
      %v928 = vpack.c.b16 %v901, %v900
      %v929 = vpack.c.b16 %v903, %v902
      %v930 = vpack.c.b16 %v905, %v904
      %v931 = vpack.c.b16 %v907, %v906
      %956 = vmatprep.subr.bf16.mxu0 0
      %957 = vmatpush1.bf16.msra.mxu0 %v915
      %958 = vmatprep.subr.bf16.mxu0 0
      %959 = vmatpush1.bf16.msra.mxu0 %v914
      %960 = vmatprep.subr.bf16.mxu0 0
      %961 = vmatpush1.bf16.msra.mxu0 %v913
      %962 = vmatprep.subr.bf16.mxu0 0
      %963 = vmatpush1.bf16.msra.mxu0 %v912
      %964 = vmatprep.subr.bf16.mxu0 0
      %965 = vmatpush1.bf16.msra.mxu0 %v911
      %966 = vmatprep.subr.bf16.mxu0 0
      %967 = vmatpush1.bf16.msra.mxu0 %v910
      %968 = vmatprep.subr.bf16.mxu0 0
      %969 = vmatpush1.bf16.msra.mxu0 %v909
      %970 = vmatprep.subr.bf16.mxu0 0
      %971 = vmatpush1.bf16.msra.mxu0 %v908
      %972 = vmatprep.subr.bf16.mxu0 0
      %973 = vmatpush2.bf16.msra.mxu0 %v923
      %974 = vmatprep.subr.bf16.mxu0 0
      %975 = vmatpush2.bf16.msra.mxu0 %v922
      %976 = vmatprep.subr.bf16.mxu0 0
      %977 = vmatpush2.bf16.msra.mxu0 %v921
      %978 = vmatprep.subr.bf16.mxu0 0
      %979 = vmatpush2.bf16.msra.mxu0 %v920
      %980 = vmatprep.subr.bf16.mxu0 0
      %981 = vmatpush2.bf16.msra.mxu0 %v919
      %982 = vmatprep.subr.bf16.mxu0 0
      %983 = vmatpush2.bf16.msra.mxu0 %v918
      %984 = vmatprep.subr.bf16.mxu0 0
      %985 = vmatpush2.bf16.msra.mxu0 %v917
      %986 = vmatprep.subr.bf16.mxu0 0
      %987 = vmatpush2.bf16.msra.mxu0 %v916
      %988 = vmatprep.mubr.bf16.mxu0 %v717
      %989 = vmatmul.mubr.bf16.gmra.mxu0 %v716
      %v990 = vpop.f32.mrf.mxu0
      %v991 = vadd.f32 %v554, %v990
      %v992 = vpop.f32.mrf.mxu0
      %v993 = vpop.f32.mrf.mxu0
      %v994 = vadd.f32 %v554, %v993
      %v995 = vpop.f32.mrf.mxu0
      %996 = vmatprep.mubr.bf16.mxu0 %v720
      %997 = vmatmul.mubr.bf16.gmra.mxu0 %v719
      %v998 = vpop.f32.mrf.mxu0
      %v999 = vadd.f32 %v554, %v998
      %v1000 = vpop.f32.mrf.mxu0
      %v1001 = vpop.f32.mrf.mxu0
      %v1002 = vadd.f32 %v554, %v1001
      %v1003 = vpop.f32.mrf.mxu0
      %1004 = vmatprep.mubr.bf16.mxu0 %v723
      %1005 = vmatmul.mubr.bf16.gmra.mxu0 %v722
      %v1006 = vpop.f32.mrf.mxu0
      %v1007 = vadd.f32 %v554, %v1006
      %v1008 = vpop.f32.mrf.mxu0
      %v1009 = vpop.f32.mrf.mxu0
      %v1010 = vadd.f32 %v554, %v1009
      %v1011 = vpop.f32.mrf.mxu0
      %1012 = vmatprep.mubr.bf16.mxu0 %v726
      %1013 = vmatmul.mubr.bf16.gmra.mxu0 %v725
      %v1014 = vpop.f32.mrf.mxu0
      %v1015 = vadd.f32 %v554, %v1014
      %v1016 = vpop.f32.mrf.mxu0
      %v1017 = vpop.f32.mrf.mxu0
      %v1018 = vadd.f32 %v554, %v1017
      %v1019 = vpop.f32.mrf.mxu0
      %1020 = vmatprep.mubr.bf16.mxu0 %v729
      %1021 = vmatmul.mubr.bf16.gmra.mxu0 %v728
      %v1022 = vpop.f32.mrf.mxu0
      %v1023 = vadd.f32 %v554, %v1022
      %v1024 = vpop.f32.mrf.mxu0
      %v1025 = vpop.f32.mrf.mxu0
      %v1026 = vadd.f32 %v554, %v1025
      %v1027 = vpop.f32.mrf.mxu0
      %1028 = vmatprep.mubr.bf16.mxu0 %v732
      %1029 = vmatmul.mubr.bf16.gmra.mxu0 %v731
      %v1030 = vpop.f32.mrf.mxu0
      %v1031 = vadd.f32 %v554, %v1030
      %v1032 = vpop.f32.mrf.mxu0
      %v1033 = vpop.f32.mrf.mxu0
      %v1034 = vadd.f32 %v554, %v1033
      %v1035 = vpop.f32.mrf.mxu0
      %1036 = vmatprep.mubr.bf16.mxu0 %v735
      %1037 = vmatmul.mubr.bf16.gmra.mxu0 %v734
      %v1038 = vpop.f32.mrf.mxu0
      %v1039 = vadd.f32 %v554, %v1038
      %v1040 = vpop.f32.mrf.mxu0
      %v1041 = vpop.f32.mrf.mxu0
      %v1042 = vadd.f32 %v554, %v1041
      %v1043 = vpop.f32.mrf.mxu0
      %1044 = vmatprep.mubr.bf16.mxu0 %v738
      %1045 = vmatmul.mubr.bf16.gmra.mxu0 %v737
      %v1046 = vpop.f32.mrf.mxu0
      %v1047 = vadd.f32 %v554, %v1046
      %v1048 = vpop.f32.mrf.mxu0
      %v1049 = vpop.f32.mrf.mxu0
      %v1050 = vadd.f32 %v554, %v1049
      %v1051 = vpop.f32.mrf.mxu0
      %1052 = vmatprep.mubr.bf16.mxu0 %v741
      %1053 = vmatmul.mubr.bf16.gmra.mxu0 %v740
      %v1054 = vpop.f32.mrf.mxu0
      %v1055 = vadd.f32 %v554, %v1054
      %v1056 = vpop.f32.mrf.mxu0
      %v1057 = vpop.f32.mrf.mxu0
      %v1058 = vadd.f32 %v554, %v1057
      %v1059 = vpop.f32.mrf.mxu0
      %1060 = vmatprep.mubr.bf16.mxu0 %v744
      %1061 = vmatmul.mubr.bf16.gmra.mxu0 %v743
      %v1062 = vpop.f32.mrf.mxu0
      %v1063 = vadd.f32 %v554, %v1062
      %v1064 = vpop.f32.mrf.mxu0
      %v1065 = vpop.f32.mrf.mxu0
      %v1066 = vadd.f32 %v554, %v1065
      %v1067 = vpop.f32.mrf.mxu0
      %1068 = vmatprep.mubr.bf16.mxu0 %v747
      %1069 = vmatmul.mubr.bf16.gmra.mxu0 %v746
      %v1070 = vpop.f32.mrf.mxu0
      %v1071 = vadd.f32 %v554, %v1070
      %v1072 = vpop.f32.mrf.mxu0
      %v1073 = vpop.f32.mrf.mxu0
      %v1074 = vadd.f32 %v554, %v1073
      %v1075 = vpop.f32.mrf.mxu0
      %1076 = vmatprep.mubr.bf16.mxu0 %v750
      %1077 = vmatmul.mubr.bf16.gmra.mxu0 %v749
      %v1078 = vpop.f32.mrf.mxu0
      %v1079 = vadd.f32 %v554, %v1078
      %v1080 = vpop.f32.mrf.mxu0
      %v1081 = vpop.f32.mrf.mxu0
      %v1082 = vadd.f32 %v554, %v1081
      %v1083 = vpop.f32.mrf.mxu0
      %1084 = vmatprep.mubr.bf16.mxu0 %v753
      %1085 = vmatmul.mubr.bf16.gmra.mxu0 %v752
      %v1086 = vpop.f32.mrf.mxu0
      %v1087 = vadd.f32 %v554, %v1086
      %v1088 = vpop.f32.mrf.mxu0
      %v1089 = vpop.f32.mrf.mxu0
      %v1090 = vadd.f32 %v554, %v1089
      %v1091 = vpop.f32.mrf.mxu0
      %1092 = vmatprep.mubr.bf16.mxu0 %v756
      %1093 = vmatmul.mubr.bf16.gmra.mxu0 %v755
      %v1094 = vpop.f32.mrf.mxu0
      %v1095 = vadd.f32 %v554, %v1094
      %v1096 = vpop.f32.mrf.mxu0
      %v1097 = vpop.f32.mrf.mxu0
      %v1098 = vadd.f32 %v554, %v1097
      %v1099 = vpop.f32.mrf.mxu0
      %1100 = vmatprep.mubr.bf16.mxu0 %v759
      %1101 = vmatmul.mubr.bf16.gmra.mxu0 %v758
      %v1102 = vpop.f32.mrf.mxu0
      %v1103 = vadd.f32 %v554, %v1102
      %v1104 = vpop.f32.mrf.mxu0
      %v1105 = vpop.f32.mrf.mxu0
      %v1106 = vadd.f32 %v554, %v1105
      %v1107 = vpop.f32.mrf.mxu0
      %1108 = vmatprep.mubr.bf16.mxu0 %v762
      %1109 = vmatmul.mubr.bf16.gmra.mxu0 %v761
      %v1110 = vpop.f32.mrf.mxu0
      %v1111 = vadd.f32 %v554, %v1110
      %v1112 = vpop.f32.mrf.mxu0
      %v1113 = vpop.f32.mrf.mxu0
      %v1114 = vadd.f32 %v554, %v1113
      %v1115 = vpop.f32.mrf.mxu0
      %1116 = vdwg.mxu0
      %1117 = vmatprep.subr.bf16.mxu0 0
      %1118 = vmatpush1.bf16.msra.mxu0 %v931
      %1119 = vmatprep.subr.bf16.mxu0 0
      %1120 = vmatpush1.bf16.msra.mxu0 %v930
      %1121 = vmatprep.subr.bf16.mxu0 0
      %1122 = vmatpush1.bf16.msra.mxu0 %v929
      %1123 = vmatprep.subr.bf16.mxu0 0
      %1124 = vmatpush1.bf16.msra.mxu0 %v928
      %1125 = vmatprep.subr.bf16.mxu0 0
      %1126 = vmatpush1.bf16.msra.mxu0 %v927
      %1127 = vmatprep.subr.bf16.mxu0 0
      %1128 = vmatpush1.bf16.msra.mxu0 %v926
      %1129 = vmatprep.subr.bf16.mxu0 0
      %1130 = vmatpush1.bf16.msra.mxu0 %v925
      %1131 = vmatprep.subr.bf16.mxu0 0
      %1132 = vmatpush1.bf16.msra.mxu0 %v924
      %1133 = vmatprep.subr.bf16.mxu0 0
      %1134 = vmatpush2.bf16.msra.mxu0 0
      %1135 = vmatprep.subr.bf16.mxu0 0
      %1136 = vmatpush2.bf16.msra.mxu0 0
      %1137 = vmatprep.subr.bf16.mxu0 0
      %1138 = vmatpush2.bf16.msra.mxu0 0
      %1139 = vmatprep.subr.bf16.mxu0 0
      %1140 = vmatpush2.bf16.msra.mxu0 0
      %1141 = vmatprep.subr.bf16.mxu0 0
      %1142 = vmatpush2.bf16.msra.mxu0 0
      %1143 = vmatprep.subr.bf16.mxu0 0
      %1144 = vmatpush2.bf16.msra.mxu0 0
      %1145 = vmatprep.subr.bf16.mxu0 0
      %1146 = vmatpush2.bf16.msra.mxu0 0
      %1147 = vmatprep.subr.bf16.mxu0 0
      %1148 = vmatpush2.bf16.msra.mxu0 0
      %1149 = vmatprep.mubr.bf16.mxu0 0
      %1150 = vmatmul.mubr.bf16.gmra.mxu0 %v718
      %v1151 = vpop.f32.mrf.mxu0
      %v1152 = vadd.f32 %v991, %v1151
      %v1153 = vpop.f32.mrf.mxu0
      %v1154 = vpop.f32.mrf.mxu0
      %v1155 = vadd.f32 %v994, %v1154
      %v1156 = vpop.f32.mrf.mxu0
      %1157 = vmatprep.mubr.bf16.mxu0 0
      %1158 = vmatmul.mubr.bf16.gmra.mxu0 %v721
      %v1159 = vpop.f32.mrf.mxu0
      %v1160 = vadd.f32 %v999, %v1159
      %v1161 = vpop.f32.mrf.mxu0
      %v1162 = vpop.f32.mrf.mxu0
      %v1163 = vadd.f32 %v1002, %v1162
      %v1164 = vpop.f32.mrf.mxu0
      %1165 = vmatprep.mubr.bf16.mxu0 0
      %1166 = vmatmul.mubr.bf16.gmra.mxu0 %v724
      %v1167 = vpop.f32.mrf.mxu0
      %v1168 = vadd.f32 %v1007, %v1167
      %v1169 = vpop.f32.mrf.mxu0
      %v1170 = vpop.f32.mrf.mxu0
      %v1171 = vadd.f32 %v1010, %v1170
      %v1172 = vpop.f32.mrf.mxu0
      %1173 = vmatprep.mubr.bf16.mxu0 0
      %1174 = vmatmul.mubr.bf16.gmra.mxu0 %v727
      %v1175 = vpop.f32.mrf.mxu0
      %v1176 = vadd.f32 %v1015, %v1175
      %v1177 = vpop.f32.mrf.mxu0
      %v1178 = vpop.f32.mrf.mxu0
      %v1179 = vadd.f32 %v1018, %v1178
      %v1180 = vpop.f32.mrf.mxu0
      %1181 = vmatprep.mubr.bf16.mxu0 0
      %1182 = vmatmul.mubr.bf16.gmra.mxu0 %v730
      %v1183 = vpop.f32.mrf.mxu0
      %v1184 = vadd.f32 %v1023, %v1183
      %v1185 = vpop.f32.mrf.mxu0
      %v1186 = vpop.f32.mrf.mxu0
      %v1187 = vadd.f32 %v1026, %v1186
      %v1188 = vpop.f32.mrf.mxu0
      %1189 = vmatprep.mubr.bf16.mxu0 0
      %1190 = vmatmul.mubr.bf16.gmra.mxu0 %v733
      %v1191 = vpop.f32.mrf.mxu0
      %v1192 = vadd.f32 %v1031, %v1191
      %v1193 = vpop.f32.mrf.mxu0
      %v1194 = vpop.f32.mrf.mxu0
      %v1195 = vadd.f32 %v1034, %v1194
      %v1196 = vpop.f32.mrf.mxu0
      %1197 = vmatprep.mubr.bf16.mxu0 0
      %1198 = vmatmul.mubr.bf16.gmra.mxu0 %v736
      %v1199 = vpop.f32.mrf.mxu0
      %v1200 = vadd.f32 %v1039, %v1199
      %v1201 = vpop.f32.mrf.mxu0
      %v1202 = vpop.f32.mrf.mxu0
      %v1203 = vadd.f32 %v1042, %v1202
      %v1204 = vpop.f32.mrf.mxu0
      %1205 = vmatprep.mubr.bf16.mxu0 0
      %1206 = vmatmul.mubr.bf16.gmra.mxu0 %v739
      %v1207 = vpop.f32.mrf.mxu0
      %v1208 = vadd.f32 %v1047, %v1207
      %v1209 = vpop.f32.mrf.mxu0
      %v1210 = vpop.f32.mrf.mxu0
      %v1211 = vadd.f32 %v1050, %v1210
      %v1212 = vpop.f32.mrf.mxu0
      %1213 = vmatprep.mubr.bf16.mxu0 0
      %1214 = vmatmul.mubr.bf16.gmra.mxu0 %v742
      %v1215 = vpop.f32.mrf.mxu0
      %v1216 = vadd.f32 %v1055, %v1215
      %v1217 = vpop.f32.mrf.mxu0
      %v1218 = vpop.f32.mrf.mxu0
      %v1219 = vadd.f32 %v1058, %v1218
      %v1220 = vpop.f32.mrf.mxu0
      %1221 = vmatprep.mubr.bf16.mxu0 0
      %1222 = vmatmul.mubr.bf16.gmra.mxu0 %v745
      %v1223 = vpop.f32.mrf.mxu0
      %v1224 = vadd.f32 %v1063, %v1223
      %v1225 = vpop.f32.mrf.mxu0
      %v1226 = vpop.f32.mrf.mxu0
      %v1227 = vadd.f32 %v1066, %v1226
      %v1228 = vpop.f32.mrf.mxu0
      %1229 = vmatprep.mubr.bf16.mxu0 0
      %1230 = vmatmul.mubr.bf16.gmra.mxu0 %v748
      %v1231 = vpop.f32.mrf.mxu0
      %v1232 = vadd.f32 %v1071, %v1231
      %v1233 = vpop.f32.mrf.mxu0
      %v1234 = vpop.f32.mrf.mxu0
      %v1235 = vadd.f32 %v1074, %v1234
      %v1236 = vpop.f32.mrf.mxu0
      %1237 = vmatprep.mubr.bf16.mxu0 0
      %1238 = vmatmul.mubr.bf16.gmra.mxu0 %v751
      %v1239 = vpop.f32.mrf.mxu0
      %v1240 = vadd.f32 %v1079, %v1239
      %v1241 = vpop.f32.mrf.mxu0
      %v1242 = vpop.f32.mrf.mxu0
      %v1243 = vadd.f32 %v1082, %v1242
      %v1244 = vpop.f32.mrf.mxu0
      %1245 = vmatprep.mubr.bf16.mxu0 0
      %1246 = vmatmul.mubr.bf16.gmra.mxu0 %v754
      %v1247 = vpop.f32.mrf.mxu0
      %v1248 = vadd.f32 %v1087, %v1247
      %v1249 = vpop.f32.mrf.mxu0
      %v1250 = vpop.f32.mrf.mxu0
      %v1251 = vadd.f32 %v1090, %v1250
      %v1252 = vpop.f32.mrf.mxu0
      %1253 = vmatprep.mubr.bf16.mxu0 0
      %1254 = vmatmul.mubr.bf16.gmra.mxu0 %v757
      %v1255 = vpop.f32.mrf.mxu0
      %v1256 = vadd.f32 %v1095, %v1255
      %v1257 = vpop.f32.mrf.mxu0
      %v1258 = vpop.f32.mrf.mxu0
      %v1259 = vadd.f32 %v1098, %v1258
      %v1260 = vpop.f32.mrf.mxu0
      %1261 = vmatprep.mubr.bf16.mxu0 0
      %1262 = vmatmul.mubr.bf16.gmra.mxu0 %v760
      %v1263 = vpop.f32.mrf.mxu0
      %v1264 = vadd.f32 %v1103, %v1263
      %v1265 = vpop.f32.mrf.mxu0
      %v1266 = vpop.f32.mrf.mxu0
      %v1267 = vadd.f32 %v1106, %v1266
      %v1268 = vpop.f32.mrf.mxu0
      %1269 = vmatprep.mubr.bf16.mxu0 0
      %1270 = vmatmul.mubr.bf16.gmra.mxu0 %v763
      %v1271 = vpop.f32.mrf.mxu0
      %v1272 = vadd.f32 %v1111, %v1271
      %v1273 = vpop.f32.mrf.mxu0
      %v1274 = vpop.f32.mrf.mxu0
      %v1275 = vadd.f32 %v1114, %v1274
      %v1276 = vpop.f32.mrf.mxu0
      %1277 = vdwg.mxu0
      %v1278 = vmax.f32 %v1152, 0.0
      %v1279 = vmax.f32 %v1155, 0.0
      %v1280 = vmax.f32 %v1160, 0.0
      %v1281 = vmax.f32 %v1163, 0.0
      %v1282 = vmax.f32 %v1168, 0.0
      %v1283 = vmax.f32 %v1171, 0.0
      %v1284 = vmax.f32 %v1176, 0.0
      %v1285 = vmax.f32 %v1179, 0.0
      %v1286 = vmax.f32 %v1184, 0.0
      %v1287 = vmax.f32 %v1187, 0.0
      %v1288 = vmax.f32 %v1192, 0.0
      %v1289 = vmax.f32 %v1195, 0.0
      %v1290 = vmax.f32 %v1200, 0.0
      %v1291 = vmax.f32 %v1203, 0.0
      %v1292 = vmax.f32 %v1208, 0.0
      %v1293 = vmax.f32 %v1211, 0.0
      %v1294 = vmax.f32 %v1216, 0.0
      %v1295 = vmax.f32 %v1219, 0.0
      %v1296 = vmax.f32 %v1224, 0.0
      %v1297 = vmax.f32 %v1227, 0.0
      %v1298 = vmax.f32 %v1232, 0.0
      %v1299 = vmax.f32 %v1235, 0.0
      %v1300 = vmax.f32 %v1240, 0.0
      %v1301 = vmax.f32 %v1243, 0.0
      %v1302 = vmax.f32 %v1248, 0.0
      %v1303 = vmax.f32 %v1251, 0.0
      %v1304 = vmax.f32 %v1256, 0.0
      %v1305 = vmax.f32 %v1259, 0.0
      %v1306 = vmax.f32 %v1264, 0.0
      %v1307 = vmax.f32 %v1267, 0.0
      %v1308 = vmax.f32 %v1272, 0.0
      %v1309 = vmax.f32 %v1275, 0.0
      %v1310 = vpack.c.bf16 %v1279, %v1278
      %v1311 = vpack.c.bf16 %v1281, %v1280
      %v1312 = vpack.c.bf16 %v1283, %v1282
      %v1313 = vpack.c.bf16 %v1285, %v1284
      %v1314 = vpack.c.bf16 %v1287, %v1286
      %v1315 = vpack.c.bf16 %v1289, %v1288
      %v1316 = vpack.c.bf16 %v1291, %v1290
      %v1317 = vpack.c.bf16 %v1293, %v1292
      %v1318 = vpack.c.bf16 %v1295, %v1294
      %v1319 = vpack.c.bf16 %v1297, %v1296
      %v1320 = vpack.c.bf16 %v1299, %v1298
      %v1321 = vpack.c.bf16 %v1301, %v1300
      %v1322 = vpack.c.bf16 %v1303, %v1302
      %v1323 = vpack.c.bf16 %v1305, %v1304
      %v1324 = vpack.c.bf16 %v1307, %v1306
      %v1325 = vpack.c.bf16 %v1309, %v1308
      %v1326 = vld [vmem:[%s411] sm:$0xf]
      %v1327 = vld [vmem:[%s411 + $0x4] sm:$0xf]
      %v1328 = vld [vmem:[%s411 + $0x8] sm:$0xf]
      %v1329 = vld [vmem:[%s411 + $0xc] sm:$0xf]
      %v1330 = vld [vmem:[%s411 + $0x10] sm:$0xf]
      %v1331 = vld [vmem:[%s411 + $0x14] sm:$0xf]
      %v1332 = vld [vmem:[%s411 + $0x18] sm:$0xf]
      %v1333 = vld [vmem:[%s411 + $0x1c] sm:$0xf]
      %v1334 = vld [vmem:[%s411 + $0x20] sm:$0xf]
      %v1335 = vld [vmem:[%s411 + $0x24] sm:$0xf]
      %v1336 = vld [vmem:[%s411 + $0x28] sm:$0xf]
      %v1337 = vld [vmem:[%s411 + $0x2c] sm:$0xf]
      %v1338 = vld [vmem:[%s411 + $0x30] sm:$0xf]
      %v1339 = vld [vmem:[%s411 + $0x34] sm:$0xf]
      %v1340 = vld [vmem:[%s411 + $0x38] sm:$0xf]
      %v1341 = vld [vmem:[%s411 + $0x3c] sm:$0xf]
      %v1342 = vld [vmem:[%s416] sm:$0x1]
      %v1344 = vlaneseq
      %v1345 = vshrl.u32 %v1344, 7
      %v1346 = vsub.s32 0, %v1345
      %v1347 = vrot.slane %v1342, %v1346
      %v1365 = vunpack.c.l.b16 %v1326
      %v1366 = vunpack.c.l.b16 %v1327
      %v1367 = vunpack.c.l.b16 %v1328
      %v1368 = vunpack.c.l.b16 %v1329
      %v1369 = vunpack.c.l.b16 %v1330
      %v1370 = vunpack.c.l.b16 %v1331
      %v1371 = vunpack.c.l.b16 %v1332
      %v1372 = vunpack.c.l.b16 %v1333
      %v1373 = vunpack.c.l.b16 %v1334
      %v1374 = vunpack.c.l.b16 %v1335
      %v1375 = vunpack.c.l.b16 %v1336
      %v1376 = vunpack.c.l.b16 %v1337
      %v1377 = vunpack.c.l.b16 %v1338
      %v1378 = vunpack.c.l.b16 %v1339
      %v1379 = vunpack.c.l.b16 %v1340
      %v1380 = vunpack.c.l.b16 %v1341
      %v1381 = vpack.c.b16 %v1366, %v1365
      %v1382 = vpack.c.b16 %v1368, %v1367
      %v1383 = vpack.c.b16 %v1370, %v1369
      %v1384 = vpack.c.b16 %v1372, %v1371
      %v1385 = vpack.c.b16 %v1374, %v1373
      %v1386 = vpack.c.b16 %v1376, %v1375
      %v1387 = vpack.c.b16 %v1378, %v1377
      %v1388 = vpack.c.b16 %v1380, %v1379
      %1397 = vmatprep.subr.bf16.mxu0 0
      %1398 = vmatpush1.bf16.msra.mxu0 %v1388
      %1399 = vmatprep.subr.bf16.mxu0 0
      %1400 = vmatpush1.bf16.msra.mxu0 %v1387
      %1401 = vmatprep.subr.bf16.mxu0 0
      %1402 = vmatpush1.bf16.msra.mxu0 %v1386
      %1403 = vmatprep.subr.bf16.mxu0 0
      %1404 = vmatpush1.bf16.msra.mxu0 %v1385
      %1405 = vmatprep.subr.bf16.mxu0 0
      %1406 = vmatpush1.bf16.msra.mxu0 %v1384
      %1407 = vmatprep.subr.bf16.mxu0 0
      %1408 = vmatpush1.bf16.msra.mxu0 %v1383
      %1409 = vmatprep.subr.bf16.mxu0 0
      %1410 = vmatpush1.bf16.msra.mxu0 %v1382
      %1411 = vmatprep.subr.bf16.mxu0 0
      %1412 = vmatpush1.bf16.msra.mxu0 %v1381
      %1413 = vmatprep.subr.bf16.mxu0 0
      %1414 = vmatpush2.bf16.msra.mxu0 0
      %1415 = vmatprep.subr.bf16.mxu0 0
      %1416 = vmatpush2.bf16.msra.mxu0 0
      %1417 = vmatprep.subr.bf16.mxu0 0
      %1418 = vmatpush2.bf16.msra.mxu0 0
      %1419 = vmatprep.subr.bf16.mxu0 0
      %1420 = vmatpush2.bf16.msra.mxu0 0
      %1421 = vmatprep.subr.bf16.mxu0 0
      %1422 = vmatpush2.bf16.msra.mxu0 0
      %1423 = vmatprep.subr.bf16.mxu0 0
      %1424 = vmatpush2.bf16.msra.mxu0 0
      %1425 = vmatprep.subr.bf16.mxu0 0
      %1426 = vmatpush2.bf16.msra.mxu0 0
      %1427 = vmatprep.subr.bf16.mxu0 0
      %1428 = vmatpush2.bf16.msra.mxu0 0
      %1429 = vmatprep.mubr.bf16.mxu0 0
      %1430 = vmatmul.mubr.bf16.gmra.mxu0 %v1310
      %v1431 = vpop.f32.mrf.mxu0
      %v1432 = vadd.f32 %v1347, %v1431
      %v1433 = vpop.f32.mrf.mxu0
      %v1434 = vpop.f32.mrf.mxu0
      %v1435 = vadd.f32 %v1347, %v1434
      %v1436 = vpop.f32.mrf.mxu0
      %1437 = vmatprep.mubr.bf16.mxu0 0
      %1438 = vmatmul.mubr.bf16.gmra.mxu0 %v1311
      %v1439 = vpop.f32.mrf.mxu0
      %v1440 = vadd.f32 %v1347, %v1439
      %v1441 = vpop.f32.mrf.mxu0
      %v1442 = vpop.f32.mrf.mxu0
      %v1443 = vadd.f32 %v1347, %v1442
      %v1444 = vpop.f32.mrf.mxu0
      %1445 = vmatprep.mubr.bf16.mxu0 0
      %1446 = vmatmul.mubr.bf16.gmra.mxu0 %v1312
      %v1447 = vpop.f32.mrf.mxu0
      %v1448 = vadd.f32 %v1347, %v1447
      %v1449 = vpop.f32.mrf.mxu0
      %v1450 = vpop.f32.mrf.mxu0
      %v1451 = vadd.f32 %v1347, %v1450
      %v1452 = vpop.f32.mrf.mxu0
      %1453 = vmatprep.mubr.bf16.mxu0 0
      %1454 = vmatmul.mubr.bf16.gmra.mxu0 %v1313
      %v1455 = vpop.f32.mrf.mxu0
      %v1456 = vadd.f32 %v1347, %v1455
      %v1457 = vpop.f32.mrf.mxu0
      %v1458 = vpop.f32.mrf.mxu0
      %v1459 = vadd.f32 %v1347, %v1458
      %v1460 = vpop.f32.mrf.mxu0
      %1461 = vmatprep.mubr.bf16.mxu0 0
      %1462 = vmatmul.mubr.bf16.gmra.mxu0 %v1314
      %v1463 = vpop.f32.mrf.mxu0
      %v1464 = vadd.f32 %v1347, %v1463
      %v1465 = vpop.f32.mrf.mxu0
      %v1466 = vpop.f32.mrf.mxu0
      %v1467 = vadd.f32 %v1347, %v1466
      %v1468 = vpop.f32.mrf.mxu0
      %1469 = vmatprep.mubr.bf16.mxu0 0
      %1470 = vmatmul.mubr.bf16.gmra.mxu0 %v1315
      %v1471 = vpop.f32.mrf.mxu0
      %v1472 = vadd.f32 %v1347, %v1471
      %v1473 = vpop.f32.mrf.mxu0
      %v1474 = vpop.f32.mrf.mxu0
      %v1475 = vadd.f32 %v1347, %v1474
      %v1476 = vpop.f32.mrf.mxu0
      %1477 = vmatprep.mubr.bf16.mxu0 0
      %1478 = vmatmul.mubr.bf16.gmra.mxu0 %v1316
      %v1479 = vpop.f32.mrf.mxu0
      %v1480 = vadd.f32 %v1347, %v1479
      %v1481 = vpop.f32.mrf.mxu0
      %v1482 = vpop.f32.mrf.mxu0
      %v1483 = vadd.f32 %v1347, %v1482
      %v1484 = vpop.f32.mrf.mxu0
      %1485 = vmatprep.mubr.bf16.mxu0 0
      %1486 = vmatmul.mubr.bf16.gmra.mxu0 %v1317
      %v1487 = vpop.f32.mrf.mxu0
      %v1488 = vadd.f32 %v1347, %v1487
      %v1489 = vpop.f32.mrf.mxu0
      %v1490 = vpop.f32.mrf.mxu0
      %v1491 = vadd.f32 %v1347, %v1490
      %v1492 = vpop.f32.mrf.mxu0
      %1493 = vmatprep.mubr.bf16.mxu0 0
      %1494 = vmatmul.mubr.bf16.gmra.mxu0 %v1318
      %v1495 = vpop.f32.mrf.mxu0
      %v1496 = vadd.f32 %v1347, %v1495
      %v1497 = vpop.f32.mrf.mxu0
      %v1498 = vpop.f32.mrf.mxu0
      %v1499 = vadd.f32 %v1347, %v1498
      %v1500 = vpop.f32.mrf.mxu0
      %1501 = vmatprep.mubr.bf16.mxu0 0
      %1502 = vmatmul.mubr.bf16.gmra.mxu0 %v1319
      %v1503 = vpop.f32.mrf.mxu0
      %v1504 = vadd.f32 %v1347, %v1503
      %v1505 = vpop.f32.mrf.mxu0
      %v1506 = vpop.f32.mrf.mxu0
      %v1507 = vadd.f32 %v1347, %v1506
      %v1508 = vpop.f32.mrf.mxu0
      %1509 = vmatprep.mubr.bf16.mxu0 0
      %1510 = vmatmul.mubr.bf16.gmra.mxu0 %v1320
      %v1511 = vpop.f32.mrf.mxu0
      %v1512 = vadd.f32 %v1347, %v1511
      %v1513 = vpop.f32.mrf.mxu0
      %v1514 = vpop.f32.mrf.mxu0
      %v1515 = vadd.f32 %v1347, %v1514
      %v1516 = vpop.f32.mrf.mxu0
      %1517 = vmatprep.mubr.bf16.mxu0 0
      %1518 = vmatmul.mubr.bf16.gmra.mxu0 %v1321
      %v1519 = vpop.f32.mrf.mxu0
      %v1520 = vadd.f32 %v1347, %v1519
      %v1521 = vpop.f32.mrf.mxu0
      %v1522 = vpop.f32.mrf.mxu0
      %v1523 = vadd.f32 %v1347, %v1522
      %v1524 = vpop.f32.mrf.mxu0
      %1525 = vmatprep.mubr.bf16.mxu0 0
      %1526 = vmatmul.mubr.bf16.gmra.mxu0 %v1322
      %v1527 = vpop.f32.mrf.mxu0
      %v1528 = vadd.f32 %v1347, %v1527
      %v1529 = vpop.f32.mrf.mxu0
      %v1530 = vpop.f32.mrf.mxu0
      %v1531 = vadd.f32 %v1347, %v1530
      %v1532 = vpop.f32.mrf.mxu0
      %1533 = vmatprep.mubr.bf16.mxu0 0
      %1534 = vmatmul.mubr.bf16.gmra.mxu0 %v1323
      %v1535 = vpop.f32.mrf.mxu0
      %v1536 = vadd.f32 %v1347, %v1535
      %v1537 = vpop.f32.mrf.mxu0
      %v1538 = vpop.f32.mrf.mxu0
      %v1539 = vadd.f32 %v1347, %v1538
      %v1540 = vpop.f32.mrf.mxu0
      %1541 = vmatprep.mubr.bf16.mxu0 0
      %1542 = vmatmul.mubr.bf16.gmra.mxu0 %v1324
      %v1543 = vpop.f32.mrf.mxu0
      %v1544 = vadd.f32 %v1347, %v1543
      %v1545 = vpop.f32.mrf.mxu0
      %v1546 = vpop.f32.mrf.mxu0
      %v1547 = vadd.f32 %v1347, %v1546
      %v1548 = vpop.f32.mrf.mxu0
      %1549 = vmatprep.mubr.bf16.mxu0 0
      %1550 = vmatmul.mubr.bf16.gmra.mxu0 %v1325
      %v1551 = vpop.f32.mrf.mxu0
      %v1552 = vadd.f32 %v1347, %v1551
      %v1553 = vpop.f32.mrf.mxu0
      %v1554 = vpop.f32.mrf.mxu0
      %v1555 = vadd.f32 %v1347, %v1554
      %v1556 = vpop.f32.mrf.mxu0
      %1557 = vdwg.mxu0
      %v1558 = vmax.f32 %v1432, 0.0
      %v1559 = vmax.f32 %v1435, 0.0
      %v1560 = vmax.f32 %v1440, 0.0
      %v1561 = vmax.f32 %v1443, 0.0
      %v1562 = vmax.f32 %v1448, 0.0
      %v1563 = vmax.f32 %v1451, 0.0
      %v1564 = vmax.f32 %v1456, 0.0
      %v1565 = vmax.f32 %v1459, 0.0
      %v1566 = vmax.f32 %v1464, 0.0
      %v1567 = vmax.f32 %v1467, 0.0
      %v1568 = vmax.f32 %v1472, 0.0
      %v1569 = vmax.f32 %v1475, 0.0
      %v1570 = vmax.f32 %v1480, 0.0
      %v1571 = vmax.f32 %v1483, 0.0
      %v1572 = vmax.f32 %v1488, 0.0
      %v1573 = vmax.f32 %v1491, 0.0
      %v1574 = vmax.f32 %v1496, 0.0
      %v1575 = vmax.f32 %v1499, 0.0
      %v1576 = vmax.f32 %v1504, 0.0
      %v1577 = vmax.f32 %v1507, 0.0
      %v1578 = vmax.f32 %v1512, 0.0
      %v1579 = vmax.f32 %v1515, 0.0
      %v1580 = vmax.f32 %v1520, 0.0
      %v1581 = vmax.f32 %v1523, 0.0
      %v1582 = vmax.f32 %v1528, 0.0
      %v1583 = vmax.f32 %v1531, 0.0
      %v1584 = vmax.f32 %v1536, 0.0
      %v1585 = vmax.f32 %v1539, 0.0
      %v1586 = vmax.f32 %v1544, 0.0
      %v1587 = vmax.f32 %v1547, 0.0
      %v1588 = vmax.f32 %v1552, 0.0
      %v1589 = vmax.f32 %v1555, 0.0
      %v1590 = vpack.c.bf16 %v1559, %v1558
      %v1591 = vpack.c.bf16 %v1561, %v1560
      %v1592 = vpack.c.bf16 %v1563, %v1562
      %v1593 = vpack.c.bf16 %v1565, %v1564
      %v1594 = vpack.c.bf16 %v1567, %v1566
      %v1595 = vpack.c.bf16 %v1569, %v1568
      %v1596 = vpack.c.bf16 %v1571, %v1570
      %v1597 = vpack.c.bf16 %v1573, %v1572
      %v1598 = vpack.c.bf16 %v1575, %v1574
      %v1599 = vpack.c.bf16 %v1577, %v1576
      %v1600 = vpack.c.bf16 %v1579, %v1578
      %v1601 = vpack.c.bf16 %v1581, %v1580
      %v1602 = vpack.c.bf16 %v1583, %v1582
      %v1603 = vpack.c.bf16 %v1585, %v1584
      %v1604 = vpack.c.bf16 %v1587, %v1586
      %v1605 = vpack.c.bf16 %v1589, %v1588
      %v1606 = vld [vmem:[%s423] sm:$0xf]
      %v1607 = vld [vmem:[%s423 + $0x4] sm:$0xf]
      %v1608 = vld [vmem:[%s423 + $0x8] sm:$0xf]
      %v1609 = vld [vmem:[%s423 + $0xc] sm:$0xf]
      %v1610 = vld [vmem:[%s423 + $0x10] sm:$0xf]
      %v1611 = vld [vmem:[%s423 + $0x14] sm:$0xf]
      %v1612 = vld [vmem:[%s423 + $0x18] sm:$0xf]
      %v1613 = vld [vmem:[%s423 + $0x1c] sm:$0xf]
      %v1614 = vld [vmem:[%s423 + $0x20] sm:$0xf]
      %v1615 = vld [vmem:[%s423 + $0x24] sm:$0xf]
      %v1616 = vld [vmem:[%s423 + $0x28] sm:$0xf]
      %v1617 = vld [vmem:[%s423 + $0x2c] sm:$0xf]
      %v1618 = vld [vmem:[%s423 + $0x30] sm:$0xf]
      %v1619 = vld [vmem:[%s423 + $0x34] sm:$0xf]
      %v1620 = vld [vmem:[%s423 + $0x38] sm:$0xf]
      %v1621 = vld [vmem:[%s423 + $0x3c] sm:$0xf]
      %v1622 = vld [vmem:[%s428] sm:$0x1]
      %v1624 = vlaneseq
      %v1625 = vshrl.u32 %v1624, 7
      %v1626 = vsub.s32 0, %v1625
      %v1627 = vrot.slane %v1622, %v1626
      %v1645 = vunpack.c.l.b16 %v1606
      %v1646 = vunpack.c.l.b16 %v1607
      %v1647 = vunpack.c.l.b16 %v1608
      %v1648 = vunpack.c.l.b16 %v1609
      %v1649 = vunpack.c.l.b16 %v1610
      %v1650 = vunpack.c.l.b16 %v1611
      %v1651 = vunpack.c.l.b16 %v1612
      %v1652 = vunpack.c.l.b16 %v1613
      %v1653 = vunpack.c.l.b16 %v1614
      %v1654 = vunpack.c.l.b16 %v1615
      %v1655 = vunpack.c.l.b16 %v1616
      %v1656 = vunpack.c.l.b16 %v1617
      %v1657 = vunpack.c.l.b16 %v1618
      %v1658 = vunpack.c.l.b16 %v1619
      %v1659 = vunpack.c.l.b16 %v1620
      %v1660 = vunpack.c.l.b16 %v1621
      %v1661 = vpack.c.b16 %v1646, %v1645
      %v1662 = vpack.c.b16 %v1648, %v1647
      %v1663 = vpack.c.b16 %v1650, %v1649
      %v1664 = vpack.c.b16 %v1652, %v1651
      %v1665 = vpack.c.b16 %v1654, %v1653
      %v1666 = vpack.c.b16 %v1656, %v1655
      %v1667 = vpack.c.b16 %v1658, %v1657
      %v1668 = vpack.c.b16 %v1660, %v1659
      %1677 = vmatprep.subr.bf16.mxu0 0
      %1678 = vmatpush1.bf16.msra.mxu0 %v1668
      %1679 = vmatprep.subr.bf16.mxu0 0
      %1680 = vmatpush1.bf16.msra.mxu0 %v1667
      %1681 = vmatprep.subr.bf16.mxu0 0
      %1682 = vmatpush1.bf16.msra.mxu0 %v1666
      %1683 = vmatprep.subr.bf16.mxu0 0
      %1684 = vmatpush1.bf16.msra.mxu0 %v1665
      %1685 = vmatprep.subr.bf16.mxu0 0
      %1686 = vmatpush1.bf16.msra.mxu0 %v1664
      %1687 = vmatprep.subr.bf16.mxu0 0
      %1688 = vmatpush1.bf16.msra.mxu0 %v1663
      %1689 = vmatprep.subr.bf16.mxu0 0
      %1690 = vmatpush1.bf16.msra.mxu0 %v1662
      %1691 = vmatprep.subr.bf16.mxu0 0
      %1692 = vmatpush1.bf16.msra.mxu0 %v1661
      %1693 = vmatprep.subr.bf16.mxu0 0
      %1694 = vmatpush2.bf16.msra.mxu0 0
      %1695 = vmatprep.subr.bf16.mxu0 0
      %1696 = vmatpush2.bf16.msra.mxu0 0
      %1697 = vmatprep.subr.bf16.mxu0 0
      %1698 = vmatpush2.bf16.msra.mxu0 0
      %1699 = vmatprep.subr.bf16.mxu0 0
      %1700 = vmatpush2.bf16.msra.mxu0 0
      %1701 = vmatprep.subr.bf16.mxu0 0
      %1702 = vmatpush2.bf16.msra.mxu0 0
      %1703 = vmatprep.subr.bf16.mxu0 0
      %1704 = vmatpush2.bf16.msra.mxu0 0
      %1705 = vmatprep.subr.bf16.mxu0 0
      %1706 = vmatpush2.bf16.msra.mxu0 0
      %1707 = vmatprep.subr.bf16.mxu0 0
      %1708 = vmatpush2.bf16.msra.mxu0 0
      %1709 = vmatprep.mubr.bf16.mxu0 0
      %1710 = vmatmul.mubr.bf16.gmra.mxu0 %v1590
      %v1711 = vpop.f32.mrf.mxu0
      %v1712 = vadd.f32 %v1627, %v1711
      %v1713 = vpop.f32.mrf.mxu0
      %v1714 = vpop.f32.mrf.mxu0
      %v1715 = vadd.f32 %v1627, %v1714
      %v1716 = vpop.f32.mrf.mxu0
      %1717 = vmatprep.mubr.bf16.mxu0 0
      %1718 = vmatmul.mubr.bf16.gmra.mxu0 %v1591
      %v1719 = vpop.f32.mrf.mxu0
      %v1720 = vadd.f32 %v1627, %v1719
      %v1721 = vpop.f32.mrf.mxu0
      %v1722 = vpop.f32.mrf.mxu0
      %v1723 = vadd.f32 %v1627, %v1722
      %v1724 = vpop.f32.mrf.mxu0
      %1725 = vmatprep.mubr.bf16.mxu0 0
      %1726 = vmatmul.mubr.bf16.gmra.mxu0 %v1592
      %v1727 = vpop.f32.mrf.mxu0
      %v1728 = vadd.f32 %v1627, %v1727
      %v1729 = vpop.f32.mrf.mxu0
      %v1730 = vpop.f32.mrf.mxu0
      %v1731 = vadd.f32 %v1627, %v1730
      %v1732 = vpop.f32.mrf.mxu0
      %1733 = vmatprep.mubr.bf16.mxu0 0
      %1734 = vmatmul.mubr.bf16.gmra.mxu0 %v1593
      %v1735 = vpop.f32.mrf.mxu0
      %v1736 = vadd.f32 %v1627, %v1735
      %v1737 = vpop.f32.mrf.mxu0
      %v1738 = vpop.f32.mrf.mxu0
      %v1739 = vadd.f32 %v1627, %v1738
      %v1740 = vpop.f32.mrf.mxu0
      %1741 = vmatprep.mubr.bf16.mxu0 0
      %1742 = vmatmul.mubr.bf16.gmra.mxu0 %v1594
      %v1743 = vpop.f32.mrf.mxu0
      %v1744 = vadd.f32 %v1627, %v1743
      %v1745 = vpop.f32.mrf.mxu0
      %v1746 = vpop.f32.mrf.mxu0
      %v1747 = vadd.f32 %v1627, %v1746
      %v1748 = vpop.f32.mrf.mxu0
      %1749 = vmatprep.mubr.bf16.mxu0 0
      %1750 = vmatmul.mubr.bf16.gmra.mxu0 %v1595
      %v1751 = vpop.f32.mrf.mxu0
      %v1752 = vadd.f32 %v1627, %v1751
      %v1753 = vpop.f32.mrf.mxu0
      %v1754 = vpop.f32.mrf.mxu0
      %v1755 = vadd.f32 %v1627, %v1754
      %v1756 = vpop.f32.mrf.mxu0
      %1757 = vmatprep.mubr.bf16.mxu0 0
      %1758 = vmatmul.mubr.bf16.gmra.mxu0 %v1596
      %v1759 = vpop.f32.mrf.mxu0
      %v1760 = vadd.f32 %v1627, %v1759
      %v1761 = vpop.f32.mrf.mxu0
      %v1762 = vpop.f32.mrf.mxu0
      %v1763 = vadd.f32 %v1627, %v1762
      %v1764 = vpop.f32.mrf.mxu0
      %1765 = vmatprep.mubr.bf16.mxu0 0
      %1766 = vmatmul.mubr.bf16.gmra.mxu0 %v1597
      %v1767 = vpop.f32.mrf.mxu0
      %v1768 = vadd.f32 %v1627, %v1767
      %v1769 = vpop.f32.mrf.mxu0
      %v1770 = vpop.f32.mrf.mxu0
      %v1771 = vadd.f32 %v1627, %v1770
      %v1772 = vpop.f32.mrf.mxu0
      %1773 = vmatprep.mubr.bf16.mxu0 0
      %1774 = vmatmul.mubr.bf16.gmra.mxu0 %v1598
      %v1775 = vpop.f32.mrf.mxu0
      %v1776 = vadd.f32 %v1627, %v1775
      %v1777 = vpop.f32.mrf.mxu0
      %v1778 = vpop.f32.mrf.mxu0
      %v1779 = vadd.f32 %v1627, %v1778
      %v1780 = vpop.f32.mrf.mxu0
      %1781 = vmatprep.mubr.bf16.mxu0 0
      %1782 = vmatmul.mubr.bf16.gmra.mxu0 %v1599
      %v1783 = vpop.f32.mrf.mxu0
      %v1784 = vadd.f32 %v1627, %v1783
      %v1785 = vpop.f32.mrf.mxu0
      %v1786 = vpop.f32.mrf.mxu0
      %v1787 = vadd.f32 %v1627, %v1786
      %v1788 = vpop.f32.mrf.mxu0
      %1789 = vmatprep.mubr.bf16.mxu0 0
      %1790 = vmatmul.mubr.bf16.gmra.mxu0 %v1600
      %v1791 = vpop.f32.mrf.mxu0
      %v1792 = vadd.f32 %v1627, %v1791
      %v1793 = vpop.f32.mrf.mxu0
      %v1794 = vpop.f32.mrf.mxu0
      %v1795 = vadd.f32 %v1627, %v1794
      %v1796 = vpop.f32.mrf.mxu0
      %1797 = vmatprep.mubr.bf16.mxu0 0
      %1798 = vmatmul.mubr.bf16.gmra.mxu0 %v1601
      %v1799 = vpop.f32.mrf.mxu0
      %v1800 = vadd.f32 %v1627, %v1799
      %v1801 = vpop.f32.mrf.mxu0
      %v1802 = vpop.f32.mrf.mxu0
      %v1803 = vadd.f32 %v1627, %v1802
      %v1804 = vpop.f32.mrf.mxu0
      %1805 = vmatprep.mubr.bf16.mxu0 0
      %1806 = vmatmul.mubr.bf16.gmra.mxu0 %v1602
      %v1807 = vpop.f32.mrf.mxu0
      %v1808 = vadd.f32 %v1627, %v1807
      %v1809 = vpop.f32.mrf.mxu0
      %v1810 = vpop.f32.mrf.mxu0
      %v1811 = vadd.f32 %v1627, %v1810
      %v1812 = vpop.f32.mrf.mxu0
      %1813 = vmatprep.mubr.bf16.mxu0 0
      %1814 = vmatmul.mubr.bf16.gmra.mxu0 %v1603
      %v1815 = vpop.f32.mrf.mxu0
      %v1816 = vadd.f32 %v1627, %v1815
      %v1817 = vpop.f32.mrf.mxu0
      %v1818 = vpop.f32.mrf.mxu0
      %v1819 = vadd.f32 %v1627, %v1818
      %v1820 = vpop.f32.mrf.mxu0
      %1821 = vmatprep.mubr.bf16.mxu0 0
      %1822 = vmatmul.mubr.bf16.gmra.mxu0 %v1604
      %v1823 = vpop.f32.mrf.mxu0
      %v1824 = vadd.f32 %v1627, %v1823
      %v1825 = vpop.f32.mrf.mxu0
      %v1826 = vpop.f32.mrf.mxu0
      %v1827 = vadd.f32 %v1627, %v1826
      %v1828 = vpop.f32.mrf.mxu0
      %1829 = vmatprep.mubr.bf16.mxu0 0
      %1830 = vmatmul.mubr.bf16.gmra.mxu0 %v1605
      %v1831 = vpop.f32.mrf.mxu0
      %v1832 = vadd.f32 %v1627, %v1831
      %v1833 = vpop.f32.mrf.mxu0
      %v1834 = vpop.f32.mrf.mxu0
      %v1835 = vadd.f32 %v1627, %v1834
      %v1836 = vpop.f32.mrf.mxu0
      %1837 = vdwg.mxu0
      %1838 = vst [vmem:[%s434] sm:$0xff] %v1712
      %1839 = vst [vmem:[%s434 + $0x8] sm:$0xff] %v1715
      %1840 = vst [vmem:[%s434 + $0x10] sm:$0xff] %v1720
      %1841 = vst [vmem:[%s434 + $0x18] sm:$0xff] %v1723
      %1842 = vst [vmem:[%s434 + $0x20] sm:$0xff] %v1728
      %1843 = vst [vmem:[%s434 + $0x28] sm:$0xff] %v1731
      %1844 = vst [vmem:[%s434 + $0x30] sm:$0xff] %v1736
      %1845 = vst [vmem:[%s434 + $0x38] sm:$0xff] %v1739
      %1846 = vst [vmem:[%s434 + $0x40] sm:$0xff] %v1744
      %1847 = vst [vmem:[%s434 + $0x48] sm:$0xff] %v1747
      %1848 = vst [vmem:[%s434 + $0x50] sm:$0xff] %v1752
      %1849 = vst [vmem:[%s434 + $0x58] sm:$0xff] %v1755
      %1850 = vst [vmem:[%s434 + $0x60] sm:$0xff] %v1760
      %1851 = vst [vmem:[%s434 + $0x68] sm:$0xff] %v1763
      %1852 = vst [vmem:[%s434 + $0x70] sm:$0xff] %v1768
      %1853 = vst [vmem:[%s434 + $0x78] sm:$0xff] %v1771
      %1854 = vst [vmem:[%s434 + $0x80] sm:$0xff] %v1776
      %1855 = vst [vmem:[%s434 + $0x88] sm:$0xff] %v1779
      %1856 = vst [vmem:[%s434 + $0x90] sm:$0xff] %v1784
      %1857 = vst [vmem:[%s434 + $0x98] sm:$0xff] %v1787
      %1858 = vst [vmem:[%s434 + $0xa0] sm:$0xff] %v1792
      %1859 = vst [vmem:[%s434 + $0xa8] sm:$0xff] %v1795
      %1860 = vst [vmem:[%s434 + $0xb0] sm:$0xff] %v1800
      %1861 = vst [vmem:[%s434 + $0xb8] sm:$0xff] %v1803
      %1862 = vst [vmem:[%s434 + $0xc0] sm:$0xff] %v1808
      %1863 = vst [vmem:[%s434 + $0xc8] sm:$0xff] %v1811
      %1864 = vst [vmem:[%s434 + $0xd0] sm:$0xff] %v1816
      %1865 = vst [vmem:[%s434 + $0xd8] sm:$0xff] %v1819
      %1866 = vst [vmem:[%s434 + $0xe0] sm:$0xff] %v1824
      %1867 = vst [vmem:[%s434 + $0xe8] sm:$0xff] %v1827
      %1868 = vst [vmem:[%s434 + $0xf0] sm:$0xff] %v1832
      %1869 = vst [vmem:[%s434 + $0xf8] sm:$0xff] %v1835
      %s1870 = smul.u32 32, %s25
      %p1871 = scmp.lt.s32.totalorder %s1870, 95
      %s1872 = scalar_select %p1871, %s1870, 95
      %s1873 = smul.addr %s1872, 8
      %s1874 = scalar_lea.vmem %s8, %s1873
      // Predicated region
      $region49: #{pseudo_graph_net_block.1} parent=47 // pred_check
        %p1875 = pneg %p237
      $region50: #{pseudo_graph_net_block.1} parent=47 // pred_check_branch
        %1877 = sbr.rel (%p1875) target = $region52
      $region51: #{pseudo_graph_net_block.1} parent=47 // pred_region
        %s1878 = smul.u32 32, %s25
      $region52: #{pseudo_graph_net_block.1} parent=47 // pred_fallthru
        _
    $region48: #{pseudo_graph_net_block.1} parent=5 // pred_fallthru
      _
    %p1879 = scmp.le.s32.totalorder 2, %s20
    // Predicated region
    $region53: #{pseudo_graph_net_block.1} parent=5 // pred_check
      %p1880 = pneg %p1879
    $region54: #{pseudo_graph_net_block.1} parent=5 // pred_check_branch
      %1882 = sbr.rel (%p1880) target = $region56
    $region55: #{pseudo_graph_net_block.1} parent=5 // pred_region
      %s1883 = ssub.s32 %s20, 2
      // Predicated region
      $region57: #{pseudo_graph_net_block.1} parent=55 // pred_check
        %p1884 = pneg %p243
      $region58: #{pseudo_graph_net_block.1} parent=55 // pred_check_branch
        %1886 = sbr.rel (%p1884) target = $region60
      $region59: #{pseudo_graph_net_block.1} parent=55 // pred_region
        %s1887 = smul.u32 32, %s26
        %p1888 = scmp.lt.s32.totalorder %s1887, 95
        %s1889 = scalar_select %p1888, %s1887, 95
        %s1890 = smul.addr %s1889, 8
        %s1891 = scalar_lea.vmem %s8, %s1890
      $region60: #{pseudo_graph_net_block.1} parent=55 // pred_fallthru
        _
    $region56: #{pseudo_graph_net_block.1} parent=5 // pred_fallthru
      _
  $region6: #{pseudo_graph_net_block.1} parent=0 // loop_footer
    %s24 = sadd.s32 1, %s20
  $region7: #{pseudo_graph_net_block.1} parent=0 // loop_footer_branch
    %19 = sbr.rel target = $region3
  $region8: #{pseudo_graph_net_block.1} parent=0 // loop_exit
    _

</llo_original>
